<compile_context>
chip_gen: v7x
topology: tpu7x:2x2x1
jax: 0.10.0
libtpu: 0.0.40
codegen_flags: <defaults>
</compile_context>

<pallas_src>
import random

import jax
import jax.numpy as jnp
import numpy as np
from jax.experimental import pallas as pl
from jax.experimental.pallas import tpu as pltpu


# ----------------------------- Pallas kernel -------------------------------
def make_seq2seq_kernel(tf_flags, S, T, Bp):
    """tf_flags is a static Python tuple -> one compile per flag pattern."""

    def kernel(src_oh_ref,    # VMEM [S*Bp, IN_pad] f32 one-hot (flattened)
               trg_oh_ref,    # VMEM [T*Bp, V_pad]  f32 one-hot (flattened)
               w_in_e_ref,    # VMEM [IN_pad, 4H]  folded emb@Wih^T + b (enc)
               w_in_d_ref,    # VMEM [V_pad, 4H]   folded emb@Wih^T + b (dec)
               whh_e_ref,     # VMEM [H, 4H]
               whh_d_ref,     # VMEM [H, 4H]
               wout_ref,      # VMEM [H, V_pad]
               bout_ref,      # VMEM [Bp, V_pad]   output bias (pads = -1e30)
               out_ref):      # VMEM [T, Bp, V_pad]
        Vp = out_ref.shape[2]
        H = whh_e_ref.shape[0]

        # Batched non-recurrent x-gate contributions: two well-shaped MXU
        # launches at kernel entry, OFF the serialized h->h critical path.
        gx_enc = jnp.dot(src_oh_ref[...], w_in_e_ref[...],
                         preferred_element_type=jnp.float32)     # [S*Bp, 4H]
        gx_dec = jnp.dot(trg_oh_ref[...], w_in_d_ref[...],
                         preferred_element_type=jnp.float32)     # [T*Bp, 4H]

        # Loop-invariant loads hoisted out of the unrolled time loops.
        whh_e = whh_e_ref[...]
        whh_d = whh_d_ref[...]
        wout = wout_ref[...]
        bout = bout_ref[...]
        w_in_d = w_in_d_ref[...]
        col = jax.lax.broadcasted_iota(jnp.int32, (Bp, Vp), 1)

        def lstm_cell(gates, c):
            # Full-vreg activations (2 EUP launches), then 32-lane slices.
            sg = jax.nn.sigmoid(gates)
            th = jnp.tanh(gates)
            i = sg[:, 0 * H:1 * H]
            f = sg[:, 1 * H:2 * H]
            g = th[:, 2 * H:3 * H]
            o = sg[:, 3 * H:4 * H]
            c_new = f * c + i * g
            h_new = o * jnp.tanh(c_new)
            return h_new, c_new

        h = jnp.zeros((Bp, H), jnp.float32)
        c = jnp.zeros((Bp, H), jnp.float32)

        # -------- encoder: per-step matmul is only K=H on the serial chain --
        # TODO(synk): switch to lax.fori_loop once S/T grow beyond ~16.
        for t in range(S):
            gates = gx_enc[t * Bp:(t + 1) * Bp] + jnp.dot(
                h, whh_e, preferred_element_type=jnp.float32)
            h, c = lstm_cell(gates, c)

        # outputs[0] stays zero; every other row is written below.
        out_ref[0] = jnp.zeros((Bp, Vp), jnp.float32)

        gx_in = gx_dec[0:Bp]                      # decoder input 0 = trg[0]

        # -------- decoder (fully unrolled, static trip count) ---------------
        for t in range(1, T):
            gates = gx_in + jnp.dot(h, whh_d,
                                    preferred_element_type=jnp.float32)
            h, c = lstm_cell(gates, c)
            logits = jnp.dot(h, wout, preferred_element_type=jnp.float32) + bout
            out_ref[t] = logits                   # lane-dense full-vreg store

            if t + 1 < T:
                if tf_flags[t]:
                    # Teacher forcing: next input's gate contribution is a
                    # precomputed slice -> argmax/select chain skipped.
                    gx_in = gx_dec[t * Bp:(t + 1) * Bp]
                else:
                    # Greedy feedback: first-max-index argmax as a one-hot
                    # (matches torch.argmax); pad lanes hold -1e30 bias so
                    # they can never win.
                    m = jnp.max(logits, axis=-1, keepdims=True)
                    idx = jnp.min(jnp.where(logits == m, col, Vp),
                                  axis=-1, keepdims=True)
                    top1_oh = (col == idx).astype(jnp.float32)
                    gx_in = jnp.dot(top1_oh, w_in_d,
                                    preferred_element_type=jnp.float32)

    return kernel


# ------------------------------ wrapper -------------------------------------
def seq2seq_forward(tf_flags, src_tok, trg_tok, p, *, lane=128):
    tf_flags = tuple(int(x) for x in tf_flags)    # static, baked at trace time
    S, B = src_tok.shape
    T, _ = trg_tok.shape
    IN = p["emb_e"].shape[0]
    V = p["emb_d"].shape[0]

    in_pad = pl.cdiv(IN, lane) * lane
    v_pad = pl.cdiv(V, lane) * lane
    Bp = pl.cdiv(B, 8) * 8                        # f32 sublane alignment

    # ---- host-side weight folding (exact: inputs are exact one-hots) ------
    w_in_e = jnp.pad(p["emb_e"] @ p["wih_e_T"] + p["b_e"],
                     ((0, in_pad - IN), (0, 0)))              # [IN_pad, 4H]
    w_in_d = jnp.pad(p["emb_d"] @ p["wih_d_T"] + p["b_d"],
                     ((0, v_pad - V), (0, 0)))                # [V_pad, 4H]
    # output projection: pad weight columns with 0; bias pads get -1e30 (f32)
    # so argmax never selects a pad lane; pre-broadcast bias to [Bp, V_pad].
    wout = jnp.pad(p["wout_T"], ((0, 0), (0, v_pad - V)))
    bout = jnp.pad(p["bout"], ((0, 0), (0, v_pad - V)), constant_values=-1e30)
    bout = jnp.broadcast_to(bout, (Bp, v_pad))

    # ---- batch-padded, lane-padded one-hot inputs (flattened to 2-D) -------
    src_tok_p = jnp.pad(src_tok, ((0, 0), (0, Bp - B)))
    trg_tok_p = jnp.pad(trg_tok, ((0, 0), (0, Bp - B)))
    src_oh = jax.nn.one_hot(src_tok_p, in_pad,
                            dtype=jnp.float32).reshape(S * Bp, in_pad)
    trg_oh = jax.nn.one_hot(trg_tok_p, v_pad,
                            dtype=jnp.float32).reshape(T * Bp, v_pad)

    # TODO(synk): at production vocab/seq sizes, replace the dense one-hot
    # inputs with scalar-prefetched token indices + HBM embedding gather,
    # tile the output over T with a BlockSpec, store weights in bf16 (keep
    # logits/bias f32), and add a batch-parallel grid axis (Bp >= 16) so
    # v7x's second TensorCore is used.
    vmem = pl.BlockSpec(memory_space=pltpu.MemorySpace.VMEM)

    out = pl.pallas_call(
        make_seq2seq_kernel(tf_flags, S, T, Bp),
        out_shape=jax.ShapeDtypeStruct((T, Bp, v_pad), jnp.float32),
        in_specs=[vmem] * 8,
        out_specs=vmem,
    )(src_oh, trg_oh, w_in_e, w_in_d, p["whh_e_T"], p["whh_d_T"], wout, bout)

    return out[:, :B, :V]


# --------------------------- pure-JAX reference ------------------------------
def reference_forward(tf_flags, src_tok, trg_tok, p):
    B = src_tok.shape[1]
    H = p["whh_e_T"].shape[0]
    V = p["wout_T"].shape[1]

    def lstm(x, h, c, wih_T, whh_T, b):
        g = x @ wih_T + h @ whh_T + b
        i = jax.nn.sigmoid(g[:, :H])
        f = jax.nn.sigmoid(g[:, H:2 * H])
        gg = jnp.tanh(g[:, 2 * H:3 * H])
        o = jax.nn.sigmoid(g[:, 3 * H:])
        c2 = f * c + i * gg
        return o * jnp.tanh(c2), c2

    h = jnp.zeros((B, H), jnp.float32)
    c = jnp.zeros((B, H), jnp.float32)
    for t in range(src_tok.shape[0]):
        h, c = lstm(p["emb_e"][src_tok[t]], h, c,
                    p["wih_e_T"], p["whh_e_T"], p["b_e"])

    outs = [jnp.zeros((B, V), jnp.float32)]
    inp = trg_tok[0]
    for t in range(1, trg_tok.shape[0]):
        h, c = lstm(p["emb_d"][inp], h, c,
                    p["wih_d_T"], p["whh_d_T"], p["b_d"])
        logits = h @ p["wout_T"] + p["bout"]
        outs.append(logits)
        top1 = jnp.argmax(logits, axis=1)
        inp = jnp.where(tf_flags[t] == 1, trg_tok[t], top1)
    return jnp.stack(outs, 0)


# ------------------------------- main ----------------------------------------
if __name__ == "__main__":
    INPUT_DIM = 12     # encoder vocab
    OUTPUT_DIM = 12    # decoder vocab
    EMB = 16
    HIDDEN = 32        # 4H = 128 -> lane-friendly gate matmuls
    B = 4
    SRC_LEN = 6
    TRG_LEN = 8

    key = jax.random.PRNGKey(0)
    ks = jax.random.split(key, 16)

    def init(k, shape, scale=0.1):
        return (scale * jax.random.normal(k, shape)).astype(jnp.float32)

    params = {
        # encoder
        "emb_e":   init(ks[0], (INPUT_DIM, EMB)),
        "wih_e_T": init(ks[1], (EMB, 4 * HIDDEN)),
        "whh_e_T": init(ks[2], (HIDDEN, 4 * HIDDEN)),
        "b_e":     init(ks[3], (1, 4 * HIDDEN)) + init(ks[4], (1, 4 * HIDDEN)),
        # decoder
        "emb_d":   init(ks[5], (OUTPUT_DIM, EMB)),
        "wih_d_T": init(ks[6], (EMB, 4 * HIDDEN)),
        "whh_d_T": init(ks[7], (HIDDEN, 4 * HIDDEN)),
        "b_d":     init(ks[8], (1, 4 * HIDDEN)) + init(ks[9], (1, 4 * HIDDEN)),
        # output projection
        "wout_T":  init(ks[10], (HIDDEN, OUTPUT_DIM)),
        "bout":    init(ks[11], (1, OUTPUT_DIM)),
    }

    src_tok = jax.random.randint(ks[12], (SRC_LEN, B), 0, INPUT_DIM, jnp.int32)
    trg_tok = jax.random.randint(ks[13], (TRG_LEN, B), 0, OUTPUT_DIM, jnp.int32)

    # Deterministic teacher-forcing decisions (stands in for random.random()),
    # now compile-time static for the Pallas kernel.
    random.seed(0)
    tf_list = [0] + [1 if random.random() < 0.5 else 0
                     for _ in range(1, TRG_LEN)]
    tf_flags = tuple(tf_list)

    out = seq2seq_forward(tf_flags, src_tok, trg_tok, params)
    out = jax.block_until_ready(out)

    ref = reference_forward(tf_flags, src_tok, trg_tok, params)
    np.testing.assert_allclose(np.asarray(out), np.asarray(ref),
                               atol=1e-4, rtol=1e-4)

    print("KERNEL_OK")
</pallas_src>

<mosaic_0001>
module attributes {stable_mosaic.version = 11 : i64} {
  func.func @kernel(%arg0: memref<48x128xf32, #tpu.memory_space<vmem>>, %arg1: memref<64x128xf32, #tpu.memory_space<vmem>>, %arg2: memref<128x128xf32, #tpu.memory_space<vmem>>, %arg3: memref<128x128xf32, #tpu.memory_space<vmem>>, %arg4: memref<32x128xf32, #tpu.memory_space<vmem>>, %arg5: memref<32x128xf32, #tpu.memory_space<vmem>>, %arg6: memref<32x128xf32, #tpu.memory_space<vmem>>, %arg7: memref<8x128xf32, #tpu.memory_space<vmem>>, %arg8: memref<8x8x128xf32, #tpu.memory_space<vmem>>) attributes {dimension_semantics = [], scalar_prefetch = 0 : i64, scratch_operands = 0 : i64, tpu.core_type = #tpu.core_type<tc>} {
    %c0 = arith.constant 0 : index
    %c0_0 = arith.constant 0 : index
    %0 = vector.load %arg0[%c0, %c0_0] : memref<48x128xf32, #tpu.memory_space<vmem>>, vector<48x128xf32>
    %c0_1 = arith.constant 0 : index
    %c0_2 = arith.constant 0 : index
    %1 = vector.load %arg2[%c0_1, %c0_2] : memref<128x128xf32, #tpu.memory_space<vmem>>, vector<128x128xf32>
    %cst = arith.constant dense<0.000000e+00> : vector<48x128xf32>
    %2 = tpu.matmul %0, %1, %cst {dimension_numbers = #tpu.dot_dimension_numbers<[1], [0], [0], [1], [0, 0, 1, 1], [], []>} : vector<48x128xf32>, vector<128x128xf32>, vector<48x128xf32> -> vector<48x128xf32>
    %c0_3 = arith.constant 0 : index
    %c0_4 = arith.constant 0 : index
    %3 = vector.load %arg1[%c0_3, %c0_4] : memref<64x128xf32, #tpu.memory_space<vmem>>, vector<64x128xf32>
    %c0_5 = arith.constant 0 : index
    %c0_6 = arith.constant 0 : index
    %4 = vector.load %arg3[%c0_5, %c0_6] : memref<128x128xf32, #tpu.memory_space<vmem>>, vector<128x128xf32>
    %cst_7 = arith.constant dense<0.000000e+00> : vector<64x128xf32>
    %5 = tpu.matmul %3, %4, %cst_7 {dimension_numbers = #tpu.dot_dimension_numbers<[1], [0], [0], [1], [0, 0, 1, 1], [], []>} : vector<64x128xf32>, vector<128x128xf32>, vector<64x128xf32> -> vector<64x128xf32>
    %c0_8 = arith.constant 0 : index
    %c0_9 = arith.constant 0 : index
    %6 = vector.load %arg4[%c0_8, %c0_9] : memref<32x128xf32, #tpu.memory_space<vmem>>, vector<32x128xf32>
    %c0_10 = arith.constant 0 : index
    %c0_11 = arith.constant 0 : index
    %7 = vector.load %arg5[%c0_10, %c0_11] : memref<32x128xf32, #tpu.memory_space<vmem>>, vector<32x128xf32>
    %c0_12 = arith.constant 0 : index
    %c0_13 = arith.constant 0 : index
    %8 = vector.load %arg6[%c0_12, %c0_13] : memref<32x128xf32, #tpu.memory_space<vmem>>, vector<32x128xf32>
    %c0_14 = arith.constant 0 : index
    %c0_15 = arith.constant 0 : index
    %9 = vector.load %arg7[%c0_14, %c0_15] : memref<8x128xf32, #tpu.memory_space<vmem>>, vector<8x128xf32>
    %c0_16 = arith.constant 0 : index
    %c0_17 = arith.constant 0 : index
    %10 = vector.load %arg3[%c0_16, %c0_17] : memref<128x128xf32, #tpu.memory_space<vmem>>, vector<128x128xf32>
    %11 = tpu.iota {dimensions = array<i32: 1>} : vector<8x128xi32>
    %cst_18 = arith.constant 0.000000e+00 : f32
    %12 = vector.broadcast %cst_18 : f32 to vector<8x32xf32>
    %cst_19 = arith.constant 0.000000e+00 : f32
    %13 = vector.broadcast %cst_19 : f32 to vector<8x32xf32>
    %14 = vector.extract_strided_slice %2 {offsets = [0, 0], sizes = [8, 128], strides = [1, 1]} : vector<48x128xf32> to vector<8x128xf32>
    %cst_20 = arith.constant dense<0.000000e+00> : vector<8x128xf32>
    %15 = tpu.matmul %12, %6, %cst_20 {dimension_numbers = #tpu.dot_dimension_numbers<[1], [0], [0], [1], [0, 0, 1, 1], [], []>} : vector<8x32xf32>, vector<32x128xf32>, vector<8x128xf32> -> vector<8x128xf32>
    %16 = arith.addf %14, %15 : vector<8x128xf32>
    %17 = arith.negf %16 : vector<8x128xf32>
    %18 = math.exp %17 : vector<8x128xf32>
    %cst_21 = arith.constant 1.000000e+00 : f32
    %19 = vector.broadcast %cst_21 : f32 to vector<8x128xf32>
    %20 = arith.addf %19, %18 : vector<8x128xf32>
    %21 = arith.divf %19, %20 : vector<8x128xf32>
    %22 = math.tanh %16 : vector<8x128xf32>
    %23 = vector.extract_strided_slice %21 {offsets = [0, 0], sizes = [8, 32], strides = [1, 1]} : vector<8x128xf32> to vector<8x32xf32>
    %24 = vector.extract_strided_slice %21 {offsets = [0, 32], sizes = [8, 32], strides = [1, 1]} : vector<8x128xf32> to vector<8x32xf32>
    %25 = vector.extract_strided_slice %22 {offsets = [0, 64], sizes = [8, 32], strides = [1, 1]} : vector<8x128xf32> to vector<8x32xf32>
    %26 = vector.extract_strided_slice %21 {offsets = [0, 96], sizes = [8, 32], strides = [1, 1]} : vector<8x128xf32> to vector<8x32xf32>
    %27 = arith.mulf %24, %13 : vector<8x32xf32>
    %28 = arith.mulf %23, %25 : vector<8x32xf32>
    %29 = arith.addf %27, %28 : vector<8x32xf32>
    %30 = math.tanh %29 : vector<8x32xf32>
    %31 = arith.mulf %26, %30 : vector<8x32xf32>
    %32 = vector.extract_strided_slice %2 {offsets = [8, 0], sizes = [8, 128], strides = [1, 1]} : vector<48x128xf32> to vector<8x128xf32>
    %cst_22 = arith.constant dense<0.000000e+00> : vector<8x128xf32>
    %33 = tpu.matmul %31, %6, %cst_22 {dimension_numbers = #tpu.dot_dimension_numbers<[1], [0], [0], [1], [0, 0, 1, 1], [], []>} : vector<8x32xf32>, vector<32x128xf32>, vector<8x128xf32> -> vector<8x128xf32>
    %34 = arith.addf %32, %33 : vector<8x128xf32>
    %35 = arith.negf %34 : vector<8x128xf32>
    %36 = math.exp %35 : vector<8x128xf32>
    %cst_23 = arith.constant 1.000000e+00 : f32
    %37 = vector.broadcast %cst_23 : f32 to vector<8x128xf32>
    %38 = arith.addf %37, %36 : vector<8x128xf32>
    %39 = arith.divf %37, %38 : vector<8x128xf32>
    %40 = math.tanh %34 : vector<8x128xf32>
    %41 = vector.extract_strided_slice %39 {offsets = [0, 0], sizes = [8, 32], strides = [1, 1]} : vector<8x128xf32> to vector<8x32xf32>
    %42 = vector.extract_strided_slice %39 {offsets = [0, 32], sizes = [8, 32], strides = [1, 1]} : vector<8x128xf32> to vector<8x32xf32>
    %43 = vector.extract_strided_slice %40 {offsets = [0, 64], sizes = [8, 32], strides = [1, 1]} : vector<8x128xf32> to vector<8x32xf32>
    %44 = vector.extract_strided_slice %39 {offsets = [0, 96], sizes = [8, 32], strides = [1, 1]} : vector<8x128xf32> to vector<8x32xf32>
    %45 = arith.mulf %42, %29 : vector<8x32xf32>
    %46 = arith.mulf %41, %43 : vector<8x32xf32>
    %47 = arith.addf %45, %46 : vector<8x32xf32>
    %48 = math.tanh %47 : vector<8x32xf32>
    %49 = arith.mulf %44, %48 : vector<8x32xf32>
    %50 = vector.extract_strided_slice %2 {offsets = [16, 0], sizes = [8, 128], strides = [1, 1]} : vector<48x128xf32> to vector<8x128xf32>
    %cst_24 = arith.constant dense<0.000000e+00> : vector<8x128xf32>
    %51 = tpu.matmul %49, %6, %cst_24 {dimension_numbers = #tpu.dot_dimension_numbers<[1], [0], [0], [1], [0, 0, 1, 1], [], []>} : vector<8x32xf32>, vector<32x128xf32>, vector<8x128xf32> -> vector<8x128xf32>
    %52 = arith.addf %50, %51 : vector<8x128xf32>
    %53 = arith.negf %52 : vector<8x128xf32>
    %54 = math.exp %53 : vector<8x128xf32>
    %cst_25 = arith.constant 1.000000e+00 : f32
    %55 = vector.broadcast %cst_25 : f32 to vector<8x128xf32>
    %56 = arith.addf %55, %54 : vector<8x128xf32>
    %57 = arith.divf %55, %56 : vector<8x128xf32>
    %58 = math.tanh %52 : vector<8x128xf32>
    %59 = vector.extract_strided_slice %57 {offsets = [0, 0], sizes = [8, 32], strides = [1, 1]} : vector<8x128xf32> to vector<8x32xf32>
    %60 = vector.extract_strided_slice %57 {offsets = [0, 32], sizes = [8, 32], strides = [1, 1]} : vector<8x128xf32> to vector<8x32xf32>
    %61 = vector.extract_strided_slice %58 {offsets = [0, 64], sizes = [8, 32], strides = [1, 1]} : vector<8x128xf32> to vector<8x32xf32>
    %62 = vector.extract_strided_slice %57 {offsets = [0, 96], sizes = [8, 32], strides = [1, 1]} : vector<8x128xf32> to vector<8x32xf32>
    %63 = arith.mulf %60, %47 : vector<8x32xf32>
    %64 = arith.mulf %59, %61 : vector<8x32xf32>
    %65 = arith.addf %63, %64 : vector<8x32xf32>
    %66 = math.tanh %65 : vector<8x32xf32>
    %67 = arith.mulf %62, %66 : vector<8x32xf32>
    %68 = vector.extract_strided_slice %2 {offsets = [24, 0], sizes = [8, 128], strides = [1, 1]} : vector<48x128xf32> to vector<8x128xf32>
    %cst_26 = arith.constant dense<0.000000e+00> : vector<8x128xf32>
    %69 = tpu.matmul %67, %6, %cst_26 {dimension_numbers = #tpu.dot_dimension_numbers<[1], [0], [0], [1], [0, 0, 1, 1], [], []>} : vector<8x32xf32>, vector<32x128xf32>, vector<8x128xf32> -> vector<8x128xf32>
    %70 = arith.addf %68, %69 : vector<8x128xf32>
    %71 = arith.negf %70 : vector<8x128xf32>
    %72 = math.exp %71 : vector<8x128xf32>
    %cst_27 = arith.constant 1.000000e+00 : f32
    %73 = vector.broadcast %cst_27 : f32 to vector<8x128xf32>
    %74 = arith.addf %73, %72 : vector<8x128xf32>
    %75 = arith.divf %73, %74 : vector<8x128xf32>
    %76 = math.tanh %70 : vector<8x128xf32>
    %77 = vector.extract_strided_slice %75 {offsets = [0, 0], sizes = [8, 32], strides = [1, 1]} : vector<8x128xf32> to vector<8x32xf32>
    %78 = vector.extract_strided_slice %75 {offsets = [0, 32], sizes = [8, 32], strides = [1, 1]} : vector<8x128xf32> to vector<8x32xf32>
    %79 = vector.extract_strided_slice %76 {offsets = [0, 64], sizes = [8, 32], strides = [1, 1]} : vector<8x128xf32> to vector<8x32xf32>
    %80 = vector.extract_strided_slice %75 {offsets = [0, 96], sizes = [8, 32], strides = [1, 1]} : vector<8x128xf32> to vector<8x32xf32>
    %81 = arith.mulf %78, %65 : vector<8x32xf32>
    %82 = arith.mulf %77, %79 : vector<8x32xf32>
    %83 = arith.addf %81, %82 : vector<8x32xf32>
    %84 = math.tanh %83 : vector<8x32xf32>
    %85 = arith.mulf %80, %84 : vector<8x32xf32>
    %86 = vector.extract_strided_slice %2 {offsets = [32, 0], sizes = [8, 128], strides = [1, 1]} : vector<48x128xf32> to vector<8x128xf32>
    %cst_28 = arith.constant dense<0.000000e+00> : vector<8x128xf32>
    %87 = tpu.matmul %85, %6, %cst_28 {dimension_numbers = #tpu.dot_dimension_numbers<[1], [0], [0], [1], [0, 0, 1, 1], [], []>} : vector<8x32xf32>, vector<32x128xf32>, vector<8x128xf32> -> vector<8x128xf32>
    %88 = arith.addf %86, %87 : vector<8x128xf32>
    %89 = arith.negf %88 : vector<8x128xf32>
    %90 = math.exp %89 : vector<8x128xf32>
    %cst_29 = arith.constant 1.000000e+00 : f32
    %91 = vector.broadcast %cst_29 : f32 to vector<8x128xf32>
    %92 = arith.addf %91, %90 : vector<8x128xf32>
    %93 = arith.divf %91, %92 : vector<8x128xf32>
    %94 = math.tanh %88 : vector<8x128xf32>
    %95 = vector.extract_strided_slice %93 {offsets = [0, 0], sizes = [8, 32], strides = [1, 1]} : vector<8x128xf32> to vector<8x32xf32>
    %96 = vector.extract_strided_slice %93 {offsets = [0, 32], sizes = [8, 32], strides = [1, 1]} : vector<8x128xf32> to vector<8x32xf32>
    %97 = vector.extract_strided_slice %94 {offsets = [0, 64], sizes = [8, 32], strides = [1, 1]} : vector<8x128xf32> to vector<8x32xf32>
    %98 = vector.extract_strided_slice %93 {offsets = [0, 96], sizes = [8, 32], strides = [1, 1]} : vector<8x128xf32> to vector<8x32xf32>
    %99 = arith.mulf %96, %83 : vector<8x32xf32>
    %100 = arith.mulf %95, %97 : vector<8x32xf32>
    %101 = arith.addf %99, %100 : vector<8x32xf32>
    %102 = math.tanh %101 : vector<8x32xf32>
    %103 = arith.mulf %98, %102 : vector<8x32xf32>
    %104 = vector.extract_strided_slice %2 {offsets = [40, 0], sizes = [8, 128], strides = [1, 1]} : vector<48x128xf32> to vector<8x128xf32>
    %cst_30 = arith.constant dense<0.000000e+00> : vector<8x128xf32>
    %105 = tpu.matmul %103, %6, %cst_30 {dimension_numbers = #tpu.dot_dimension_numbers<[1], [0], [0], [1], [0, 0, 1, 1], [], []>} : vector<8x32xf32>, vector<32x128xf32>, vector<8x128xf32> -> vector<8x128xf32>
    %106 = arith.addf %104, %105 : vector<8x128xf32>
    %107 = arith.negf %106 : vector<8x128xf32>
    %108 = math.exp %107 : vector<8x128xf32>
    %cst_31 = arith.constant 1.000000e+00 : f32
    %109 = vector.broadcast %cst_31 : f32 to vector<8x128xf32>
    %110 = arith.addf %109, %108 : vector<8x128xf32>
    %111 = arith.divf %109, %110 : vector<8x128xf32>
    %112 = math.tanh %106 : vector<8x128xf32>
    %113 = vector.extract_strided_slice %111 {offsets = [0, 0], sizes = [8, 32], strides = [1, 1]} : vector<8x128xf32> to vector<8x32xf32>
    %114 = vector.extract_strided_slice %111 {offsets = [0, 32], sizes = [8, 32], strides = [1, 1]} : vector<8x128xf32> to vector<8x32xf32>
    %115 = vector.extract_strided_slice %112 {offsets = [0, 64], sizes = [8, 32], strides = [1, 1]} : vector<8x128xf32> to vector<8x32xf32>
    %116 = vector.extract_strided_slice %111 {offsets = [0, 96], sizes = [8, 32], strides = [1, 1]} : vector<8x128xf32> to vector<8x32xf32>
    %117 = arith.mulf %114, %101 : vector<8x32xf32>
    %118 = arith.mulf %113, %115 : vector<8x32xf32>
    %119 = arith.addf %117, %118 : vector<8x32xf32>
    %120 = math.tanh %119 : vector<8x32xf32>
    %121 = arith.mulf %116, %120 : vector<8x32xf32>
    %cst_32 = arith.constant 0.000000e+00 : f32
    %122 = vector.broadcast %cst_32 : f32 to vector<8x128xf32>
    %c0_33 = arith.constant 0 : index
    %c0_34 = arith.constant 0 : index
    %c0_35 = arith.constant 0 : index
    %123 = vector.load %arg8[%c0_33, %c0_34, %c0_35] : memref<8x8x128xf32, #tpu.memory_space<vmem>>, vector<1x8x128xf32>
    %124 = vector.shape_cast %123 : vector<1x8x128xf32> to vector<8x128xf32>
    %125 = vector.shape_cast %122 : vector<8x128xf32> to vector<1x8x128xf32>
    tpu.vector_store %arg8[%c0_33, %c0_34, %c0_35], %125 {strides = array<i32>} : memref<8x8x128xf32, #tpu.memory_space<vmem>>, vector<1x8x128xf32>,
    %126 = vector.extract_strided_slice %5 {offsets = [0, 0], sizes = [8, 128], strides = [1, 1]} : vector<64x128xf32> to vector<8x128xf32>
    %cst_36 = arith.constant dense<0.000000e+00> : vector<8x128xf32>
    %127 = tpu.matmul %121, %7, %cst_36 {dimension_numbers = #tpu.dot_dimension_numbers<[1], [0], [0], [1], [0, 0, 1, 1], [], []>} : vector<8x32xf32>, vector<32x128xf32>, vector<8x128xf32> -> vector<8x128xf32>
    %128 = arith.addf %126, %127 : vector<8x128xf32>
    %129 = arith.negf %128 : vector<8x128xf32>
    %130 = math.exp %129 : vector<8x128xf32>
    %cst_37 = arith.constant 1.000000e+00 : f32
    %131 = vector.broadcast %cst_37 : f32 to vector<8x128xf32>
    %132 = arith.addf %131, %130 : vector<8x128xf32>
    %133 = arith.divf %131, %132 : vector<8x128xf32>
    %134 = math.tanh %128 : vector<8x128xf32>
    %135 = vector.extract_strided_slice %133 {offsets = [0, 0], sizes = [8, 32], strides = [1, 1]} : vector<8x128xf32> to vector<8x32xf32>
    %136 = vector.extract_strided_slice %133 {offsets = [0, 32], sizes = [8, 32], strides = [1, 1]} : vector<8x128xf32> to vector<8x32xf32>
    %137 = vector.extract_strided_slice %134 {offsets = [0, 64], sizes = [8, 32], strides = [1, 1]} : vector<8x128xf32> to vector<8x32xf32>
    %138 = vector.extract_strided_slice %133 {offsets = [0, 96], sizes = [8, 32], strides = [1, 1]} : vector<8x128xf32> to vector<8x32xf32>
    %139 = arith.mulf %136, %119 : vector<8x32xf32>
    %140 = arith.mulf %135, %137 : vector<8x32xf32>
    %141 = arith.addf %139, %140 : vector<8x32xf32>
    %142 = math.tanh %141 : vector<8x32xf32>
    %143 = arith.mulf %138, %142 : vector<8x32xf32>
    %cst_38 = arith.constant dense<0.000000e+00> : vector<8x128xf32>
    %144 = tpu.matmul %143, %8, %cst_38 {dimension_numbers = #tpu.dot_dimension_numbers<[1], [0], [0], [1], [0, 0, 1, 1], [], []>} : vector<8x32xf32>, vector<32x128xf32>, vector<8x128xf32> -> vector<8x128xf32>
    %145 = arith.addf %144, %9 : vector<8x128xf32>
    %c1 = arith.constant 1 : index
    %c0_39 = arith.constant 0 : index
    %c0_40 = arith.constant 0 : index
    %146 = vector.load %arg8[%c1, %c0_39, %c0_40] : memref<8x8x128xf32, #tpu.memory_space<vmem>>, vector<1x8x128xf32>
    %147 = vector.shape_cast %146 : vector<1x8x128xf32> to vector<8x128xf32>
    %148 = vector.shape_cast %145 : vector<8x128xf32> to vector<1x8x128xf32>
    tpu.vector_store %arg8[%c1, %c0_39, %c0_40], %148 {strides = array<i32>} : memref<8x8x128xf32, #tpu.memory_space<vmem>>, vector<1x8x128xf32>,
    %cst_41 = arith.constant dense<0xFF800000> : vector<8xf32>
    %149 = vector.multi_reduction <maximumf>, %145, %cst_41 [1] : vector<8x128xf32> to vector<8xf32>
    %150 = vector.shape_cast %149 : vector<8xf32> to vector<8x1xf32>
    %151 = vector.broadcast %150 : vector<8x1xf32> to vector<8x128xf32>
    %152 = arith.cmpf oeq, %145, %151 : vector<8x128xf32>
    %c128_i32 = arith.constant 128 : i32
    %153 = vector.broadcast %c128_i32 : i32 to vector<8x128xi32>
    %154 = arith.select %152, %11, %153 : vector<8x128xi1>, vector<8x128xi32>
    %cst_42 = arith.constant dense<2147483647> : vector<8xi32>
    %155 = vector.multi_reduction <minsi>, %154, %cst_42 [1] : vector<8x128xi32> to vector<8xi32>
    %156 = vector.shape_cast %155 : vector<8xi32> to vector<8x1xi32>
    %157 = vector.broadcast %156 : vector<8x1xi32> to vector<8x128xi32>
    %158 = arith.cmpi eq, %11, %157 : vector<8x128xi32>
    %159 = arith.extui %158 : vector<8x128xi1> to vector<8x128xi32>
    %160 = arith.sitofp %159 : vector<8x128xi32> to vector<8x128xf32>
    %cst_43 = arith.constant dense<0.000000e+00> : vector<8x128xf32>
    %161 = tpu.matmul %160, %10, %cst_43 {dimension_numbers = #tpu.dot_dimension_numbers<[1], [0], [0], [1], [0, 0, 1, 1], [], []>} : vector<8x128xf32>, vector<128x128xf32>, vector<8x128xf32> -> vector<8x128xf32>
    %cst_44 = arith.constant dense<0.000000e+00> : vector<8x128xf32>
    %162 = tpu.matmul %143, %7, %cst_44 {dimension_numbers = #tpu.dot_dimension_numbers<[1], [0], [0], [1], [0, 0, 1, 1], [], []>} : vector<8x32xf32>, vector<32x128xf32>, vector<8x128xf32> -> vector<8x128xf32>
    %163 = arith.addf %161, %162 : vector<8x128xf32>
    %164 = arith.negf %163 : vector<8x128xf32>
    %165 = math.exp %164 : vector<8x128xf32>
    %cst_45 = arith.constant 1.000000e+00 : f32
    %166 = vector.broadcast %cst_45 : f32 to vector<8x128xf32>
    %167 = arith.addf %166, %165 : vector<8x128xf32>
    %168 = arith.divf %166, %167 : vector<8x128xf32>
    %169 = math.tanh %163 : vector<8x128xf32>
    %170 = vector.extract_strided_slice %168 {offsets = [0, 0], sizes = [8, 32], strides = [1, 1]} : vector<8x128xf32> to vector<8x32xf32>
    %171 = vector.extract_strided_slice %168 {offsets = [0, 32], sizes = [8, 32], strides = [1, 1]} : vector<8x128xf32> to vector<8x32xf32>
    %172 = vector.extract_strided_slice %169 {offsets = [0, 64], sizes = [8, 32], strides = [1, 1]} : vector<8x128xf32> to vector<8x32xf32>
    %173 = vector.extract_strided_slice %168 {offsets = [0, 96], sizes = [8, 32], strides = [1, 1]} : vector<8x128xf32> to vector<8x32xf32>
    %174 = arith.mulf %171, %141 : vector<8x32xf32>
    %175 = arith.mulf %170, %172 : vector<8x32xf32>
    %176 = arith.addf %174, %175 : vector<8x32xf32>
    %177 = math.tanh %176 : vector<8x32xf32>
    %178 = arith.mulf %173, %177 : vector<8x32xf32>
    %cst_46 = arith.constant dense<0.000000e+00> : vector<8x128xf32>
    %179 = tpu.matmul %178, %8, %cst_46 {dimension_numbers = #tpu.dot_dimension_numbers<[1], [0], [0], [1], [0, 0, 1, 1], [], []>} : vector<8x32xf32>, vector<32x128xf32>, vector<8x128xf32> -> vector<8x128xf32>
    %180 = arith.addf %179, %9 : vector<8x128xf32>
    %c2 = arith.constant 2 : index
    %c0_47 = arith.constant 0 : index
    %c0_48 = arith.constant 0 : index
    %181 = vector.load %arg8[%c2, %c0_47, %c0_48] : memref<8x8x128xf32, #tpu.memory_space<vmem>>, vector<1x8x128xf32>
    %182 = vector.shape_cast %181 : vector<1x8x128xf32> to vector<8x128xf32>
    %183 = vector.shape_cast %180 : vector<8x128xf32> to vector<1x8x128xf32>
    tpu.vector_store %arg8[%c2, %c0_47, %c0_48], %183 {strides = array<i32>} : memref<8x8x128xf32, #tpu.memory_space<vmem>>, vector<1x8x128xf32>,
    %cst_49 = arith.constant dense<0xFF800000> : vector<8xf32>
    %184 = vector.multi_reduction <maximumf>, %180, %cst_49 [1] : vector<8x128xf32> to vector<8xf32>
    %185 = vector.shape_cast %184 : vector<8xf32> to vector<8x1xf32>
    %186 = vector.broadcast %185 : vector<8x1xf32> to vector<8x128xf32>
    %187 = arith.cmpf oeq, %180, %186 : vector<8x128xf32>
    %c128_i32_50 = arith.constant 128 : i32
    %188 = vector.broadcast %c128_i32_50 : i32 to vector<8x128xi32>
    %189 = arith.select %187, %11, %188 : vector<8x128xi1>, vector<8x128xi32>
    %cst_51 = arith.constant dense<2147483647> : vector<8xi32>
    %190 = vector.multi_reduction <minsi>, %189, %cst_51 [1] : vector<8x128xi32> to vector<8xi32>
    %191 = vector.shape_cast %190 : vector<8xi32> to vector<8x1xi32>
    %192 = vector.broadcast %191 : vector<8x1xi32> to vector<8x128xi32>
    %193 = arith.cmpi eq, %11, %192 : vector<8x128xi32>
    %194 = arith.extui %193 : vector<8x128xi1> to vector<8x128xi32>
    %195 = arith.sitofp %194 : vector<8x128xi32> to vector<8x128xf32>
    %cst_52 = arith.constant dense<0.000000e+00> : vector<8x128xf32>
    %196 = tpu.matmul %195, %10, %cst_52 {dimension_numbers = #tpu.dot_dimension_numbers<[1], [0], [0], [1], [0, 0, 1, 1], [], []>} : vector<8x128xf32>, vector<128x128xf32>, vector<8x128xf32> -> vector<8x128xf32>
    %cst_53 = arith.constant dense<0.000000e+00> : vector<8x128xf32>
    %197 = tpu.matmul %178, %7, %cst_53 {dimension_numbers = #tpu.dot_dimension_numbers<[1], [0], [0], [1], [0, 0, 1, 1], [], []>} : vector<8x32xf32>, vector<32x128xf32>, vector<8x128xf32> -> vector<8x128xf32>
    %198 = arith.addf %196, %197 : vector<8x128xf32>
    %199 = arith.negf %198 : vector<8x128xf32>
    %200 = math.exp %199 : vector<8x128xf32>
    %cst_54 = arith.constant 1.000000e+00 : f32
    %201 = vector.broadcast %cst_54 : f32 to vector<8x128xf32>
    %202 = arith.addf %201, %200 : vector<8x128xf32>
    %203 = arith.divf %201, %202 : vector<8x128xf32>
    %204 = math.tanh %198 : vector<8x128xf32>
    %205 = vector.extract_strided_slice %203 {offsets = [0, 0], sizes = [8, 32], strides = [1, 1]} : vector<8x128xf32> to vector<8x32xf32>
    %206 = vector.extract_strided_slice %203 {offsets = [0, 32], sizes = [8, 32], strides = [1, 1]} : vector<8x128xf32> to vector<8x32xf32>
    %207 = vector.extract_strided_slice %204 {offsets = [0, 64], sizes = [8, 32], strides = [1, 1]} : vector<8x128xf32> to vector<8x32xf32>
    %208 = vector.extract_strided_slice %203 {offsets = [0, 96], sizes = [8, 32], strides = [1, 1]} : vector<8x128xf32> to vector<8x32xf32>
    %209 = arith.mulf %206, %176 : vector<8x32xf32>
    %210 = arith.mulf %205, %207 : vector<8x32xf32>
    %211 = arith.addf %209, %210 : vector<8x32xf32>
    %212 = math.tanh %211 : vector<8x32xf32>
    %213 = arith.mulf %208, %212 : vector<8x32xf32>
    %cst_55 = arith.constant dense<0.000000e+00> : vector<8x128xf32>
    %214 = tpu.matmul %213, %8, %cst_55 {dimension_numbers = #tpu.dot_dimension_numbers<[1], [0], [0], [1], [0, 0, 1, 1], [], []>} : vector<8x32xf32>, vector<32x128xf32>, vector<8x128xf32> -> vector<8x128xf32>
    %215 = arith.addf %214, %9 : vector<8x128xf32>
    %c3 = arith.constant 3 : index
    %c0_56 = arith.constant 0 : index
    %c0_57 = arith.constant 0 : index
    %216 = vector.load %arg8[%c3, %c0_56, %c0_57] : memref<8x8x128xf32, #tpu.memory_space<vmem>>, vector<1x8x128xf32>
    %217 = vector.shape_cast %216 : vector<1x8x128xf32> to vector<8x128xf32>
    %218 = vector.shape_cast %215 : vector<8x128xf32> to vector<1x8x128xf32>
    tpu.vector_store %arg8[%c3, %c0_56, %c0_57], %218 {strides = array<i32>} : memref<8x8x128xf32, #tpu.memory_space<vmem>>, vector<1x8x128xf32>,
    %219 = vector.extract_strided_slice %5 {offsets = [24, 0], sizes = [8, 128], strides = [1, 1]} : vector<64x128xf32> to vector<8x128xf32>
    %cst_58 = arith.constant dense<0.000000e+00> : vector<8x128xf32>
    %220 = tpu.matmul %213, %7, %cst_58 {dimension_numbers = #tpu.dot_dimension_numbers<[1], [0], [0], [1], [0, 0, 1, 1], [], []>} : vector<8x32xf32>, vector<32x128xf32>, vector<8x128xf32> -> vector<8x128xf32>
    %221 = arith.addf %219, %220 : vector<8x128xf32>
    %222 = arith.negf %221 : vector<8x128xf32>
    %223 = math.exp %222 : vector<8x128xf32>
    %cst_59 = arith.constant 1.000000e+00 : f32
    %224 = vector.broadcast %cst_59 : f32 to vector<8x128xf32>
    %225 = arith.addf %224, %223 : vector<8x128xf32>
    %226 = arith.divf %224, %225 : vector<8x128xf32>
    %227 = math.tanh %221 : vector<8x128xf32>
    %228 = vector.extract_strided_slice %226 {offsets = [0, 0], sizes = [8, 32], strides = [1, 1]} : vector<8x128xf32> to vector<8x32xf32>
    %229 = vector.extract_strided_slice %226 {offsets = [0, 32], sizes = [8, 32], strides = [1, 1]} : vector<8x128xf32> to vector<8x32xf32>
    %230 = vector.extract_strided_slice %227 {offsets = [0, 64], sizes = [8, 32], strides = [1, 1]} : vector<8x128xf32> to vector<8x32xf32>
    %231 = vector.extract_strided_slice %226 {offsets = [0, 96], sizes = [8, 32], strides = [1, 1]} : vector<8x128xf32> to vector<8x32xf32>
    %232 = arith.mulf %229, %211 : vector<8x32xf32>
    %233 = arith.mulf %228, %230 : vector<8x32xf32>
    %234 = arith.addf %232, %233 : vector<8x32xf32>
    %235 = math.tanh %234 : vector<8x32xf32>
    %236 = arith.mulf %231, %235 : vector<8x32xf32>
    %cst_60 = arith.constant dense<0.000000e+00> : vector<8x128xf32>
    %237 = tpu.matmul %236, %8, %cst_60 {dimension_numbers = #tpu.dot_dimension_numbers<[1], [0], [0], [1], [0, 0, 1, 1], [], []>} : vector<8x32xf32>, vector<32x128xf32>, vector<8x128xf32> -> vector<8x128xf32>
    %238 = arith.addf %237, %9 : vector<8x128xf32>
    %c4 = arith.constant 4 : index
    %c0_61 = arith.constant 0 : index
    %c0_62 = arith.constant 0 : index
    %239 = vector.load %arg8[%c4, %c0_61, %c0_62] : memref<8x8x128xf32, #tpu.memory_space<vmem>>, vector<1x8x128xf32>
    %240 = vector.shape_cast %239 : vector<1x8x128xf32> to vector<8x128xf32>
    %241 = vector.shape_cast %238 : vector<8x128xf32> to vector<1x8x128xf32>
    tpu.vector_store %arg8[%c4, %c0_61, %c0_62], %241 {strides = array<i32>} : memref<8x8x128xf32, #tpu.memory_space<vmem>>, vector<1x8x128xf32>,
    %242 = vector.extract_strided_slice %5 {offsets = [32, 0], sizes = [8, 128], strides = [1, 1]} : vector<64x128xf32> to vector<8x128xf32>
    %cst_63 = arith.constant dense<0.000000e+00> : vector<8x128xf32>
    %243 = tpu.matmul %236, %7, %cst_63 {dimension_numbers = #tpu.dot_dimension_numbers<[1], [0], [0], [1], [0, 0, 1, 1], [], []>} : vector<8x32xf32>, vector<32x128xf32>, vector<8x128xf32> -> vector<8x128xf32>
    %244 = arith.addf %242, %243 : vector<8x128xf32>
    %245 = arith.negf %244 : vector<8x128xf32>
    %246 = math.exp %245 : vector<8x128xf32>
    %cst_64 = arith.constant 1.000000e+00 : f32
    %247 = vector.broadcast %cst_64 : f32 to vector<8x128xf32>
    %248 = arith.addf %247, %246 : vector<8x128xf32>
    %249 = arith.divf %247, %248 : vector<8x128xf32>
    %250 = math.tanh %244 : vector<8x128xf32>
    %251 = vector.extract_strided_slice %249 {offsets = [0, 0], sizes = [8, 32], strides = [1, 1]} : vector<8x128xf32> to vector<8x32xf32>
    %252 = vector.extract_strided_slice %249 {offsets = [0, 32], sizes = [8, 32], strides = [1, 1]} : vector<8x128xf32> to vector<8x32xf32>
    %253 = vector.extract_strided_slice %250 {offsets = [0, 64], sizes = [8, 32], strides = [1, 1]} : vector<8x128xf32> to vector<8x32xf32>
    %254 = vector.extract_strided_slice %249 {offsets = [0, 96], sizes = [8, 32], strides = [1, 1]} : vector<8x128xf32> to vector<8x32xf32>
    %255 = arith.mulf %252, %234 : vector<8x32xf32>
    %256 = arith.mulf %251, %253 : vector<8x32xf32>
    %257 = arith.addf %255, %256 : vector<8x32xf32>
    %258 = math.tanh %257 : vector<8x32xf32>
    %259 = arith.mulf %254, %258 : vector<8x32xf32>
    %cst_65 = arith.constant dense<0.000000e+00> : vector<8x128xf32>
    %260 = tpu.matmul %259, %8, %cst_65 {dimension_numbers = #tpu.dot_dimension_numbers<[1], [0], [0], [1], [0, 0, 1, 1], [], []>} : vector<8x32xf32>, vector<32x128xf32>, vector<8x128xf32> -> vector<8x128xf32>
    %261 = arith.addf %260, %9 : vector<8x128xf32>
    %c5 = arith.constant 5 : index
    %c0_66 = arith.constant 0 : index
    %c0_67 = arith.constant 0 : index
    %262 = vector.load %arg8[%c5, %c0_66, %c0_67] : memref<8x8x128xf32, #tpu.memory_space<vmem>>, vector<1x8x128xf32>
    %263 = vector.shape_cast %262 : vector<1x8x128xf32> to vector<8x128xf32>
    %264 = vector.shape_cast %261 : vector<8x128xf32> to vector<1x8x128xf32>
    tpu.vector_store %arg8[%c5, %c0_66, %c0_67], %264 {strides = array<i32>} : memref<8x8x128xf32, #tpu.memory_space<vmem>>, vector<1x8x128xf32>,
    %cst_68 = arith.constant dense<0xFF800000> : vector<8xf32>
    %265 = vector.multi_reduction <maximumf>, %261, %cst_68 [1] : vector<8x128xf32> to vector<8xf32>
    %266 = vector.shape_cast %265 : vector<8xf32> to vector<8x1xf32>
    %267 = vector.broadcast %266 : vector<8x1xf32> to vector<8x128xf32>
    %268 = arith.cmpf oeq, %261, %267 : vector<8x128xf32>
    %c128_i32_69 = arith.constant 128 : i32
    %269 = vector.broadcast %c128_i32_69 : i32 to vector<8x128xi32>
    %270 = arith.select %268, %11, %269 : vector<8x128xi1>, vector<8x128xi32>
    %cst_70 = arith.constant dense<2147483647> : vector<8xi32>
    %271 = vector.multi_reduction <minsi>, %270, %cst_70 [1] : vector<8x128xi32> to vector<8xi32>
    %272 = vector.shape_cast %271 : vector<8xi32> to vector<8x1xi32>
    %273 = vector.broadcast %272 : vector<8x1xi32> to vector<8x128xi32>
    %274 = arith.cmpi eq, %11, %273 : vector<8x128xi32>
    %275 = arith.extui %274 : vector<8x128xi1> to vector<8x128xi32>
    %276 = arith.sitofp %275 : vector<8x128xi32> to vector<8x128xf32>
    %cst_71 = arith.constant dense<0.000000e+00> : vector<8x128xf32>
    %277 = tpu.matmul %276, %10, %cst_71 {dimension_numbers = #tpu.dot_dimension_numbers<[1], [0], [0], [1], [0, 0, 1, 1], [], []>} : vector<8x128xf32>, vector<128x128xf32>, vector<8x128xf32> -> vector<8x128xf32>
    %cst_72 = arith.constant dense<0.000000e+00> : vector<8x128xf32>
    %278 = tpu.matmul %259, %7, %cst_72 {dimension_numbers = #tpu.dot_dimension_numbers<[1], [0], [0], [1], [0, 0, 1, 1], [], []>} : vector<8x32xf32>, vector<32x128xf32>, vector<8x128xf32> -> vector<8x128xf32>
    %279 = arith.addf %277, %278 : vector<8x128xf32>
    %280 = arith.negf %279 : vector<8x128xf32>
    %281 = math.exp %280 : vector<8x128xf32>
    %cst_73 = arith.constant 1.000000e+00 : f32
    %282 = vector.broadcast %cst_73 : f32 to vector<8x128xf32>
    %283 = arith.addf %282, %281 : vector<8x128xf32>
    %284 = arith.divf %282, %283 : vector<8x128xf32>
    %285 = math.tanh %279 : vector<8x128xf32>
    %286 = vector.extract_strided_slice %284 {offsets = [0, 0], sizes = [8, 32], strides = [1, 1]} : vector<8x128xf32> to vector<8x32xf32>
    %287 = vector.extract_strided_slice %284 {offsets = [0, 32], sizes = [8, 32], strides = [1, 1]} : vector<8x128xf32> to vector<8x32xf32>
    %288 = vector.extract_strided_slice %285 {offsets = [0, 64], sizes = [8, 32], strides = [1, 1]} : vector<8x128xf32> to vector<8x32xf32>
    %289 = vector.extract_strided_slice %284 {offsets = [0, 96], sizes = [8, 32], strides = [1, 1]} : vector<8x128xf32> to vector<8x32xf32>
    %290 = arith.mulf %287, %257 : vector<8x32xf32>
    %291 = arith.mulf %286, %288 : vector<8x32xf32>
    %292 = arith.addf %290, %291 : vector<8x32xf32>
    %293 = math.tanh %292 : vector<8x32xf32>
    %294 = arith.mulf %289, %293 : vector<8x32xf32>
    %cst_74 = arith.constant dense<0.000000e+00> : vector<8x128xf32>
    %295 = tpu.matmul %294, %8, %cst_74 {dimension_numbers = #tpu.dot_dimension_numbers<[1], [0], [0], [1], [0, 0, 1, 1], [], []>} : vector<8x32xf32>, vector<32x128xf32>, vector<8x128xf32> -> vector<8x128xf32>
    %296 = arith.addf %295, %9 : vector<8x128xf32>
    %c6 = arith.constant 6 : index
    %c0_75 = arith.constant 0 : index
    %c0_76 = arith.constant 0 : index
    %297 = vector.load %arg8[%c6, %c0_75, %c0_76] : memref<8x8x128xf32, #tpu.memory_space<vmem>>, vector<1x8x128xf32>
    %298 = vector.shape_cast %297 : vector<1x8x128xf32> to vector<8x128xf32>
    %299 = vector.shape_cast %296 : vector<8x128xf32> to vector<1x8x128xf32>
    tpu.vector_store %arg8[%c6, %c0_75, %c0_76], %299 {strides = array<i32>} : memref<8x8x128xf32, #tpu.memory_space<vmem>>, vector<1x8x128xf32>,
    %300 = vector.extract_strided_slice %5 {offsets = [48, 0], sizes = [8, 128], strides = [1, 1]} : vector<64x128xf32> to vector<8x128xf32>
    %cst_77 = arith.constant dense<0.000000e+00> : vector<8x128xf32>
    %301 = tpu.matmul %294, %7, %cst_77 {dimension_numbers = #tpu.dot_dimension_numbers<[1], [0], [0], [1], [0, 0, 1, 1], [], []>} : vector<8x32xf32>, vector<32x128xf32>, vector<8x128xf32> -> vector<8x128xf32>
    %302 = arith.addf %300, %301 : vector<8x128xf32>
    %303 = arith.negf %302 : vector<8x128xf32>
    %304 = math.exp %303 : vector<8x128xf32>
    %cst_78 = arith.constant 1.000000e+00 : f32
    %305 = vector.broadcast %cst_78 : f32 to vector<8x128xf32>
    %306 = arith.addf %305, %304 : vector<8x128xf32>
    %307 = arith.divf %305, %306 : vector<8x128xf32>
    %308 = math.tanh %302 : vector<8x128xf32>
    %309 = vector.extract_strided_slice %307 {offsets = [0, 0], sizes = [8, 32], strides = [1, 1]} : vector<8x128xf32> to vector<8x32xf32>
    %310 = vector.extract_strided_slice %307 {offsets = [0, 32], sizes = [8, 32], strides = [1, 1]} : vector<8x128xf32> to vector<8x32xf32>
    %311 = vector.extract_strided_slice %308 {offsets = [0, 64], sizes = [8, 32], strides = [1, 1]} : vector<8x128xf32> to vector<8x32xf32>
    %312 = vector.extract_strided_slice %307 {offsets = [0, 96], sizes = [8, 32], strides = [1, 1]} : vector<8x128xf32> to vector<8x32xf32>
    %313 = arith.mulf %310, %292 : vector<8x32xf32>
    %314 = arith.mulf %309, %311 : vector<8x32xf32>
    %315 = arith.addf %313, %314 : vector<8x32xf32>
    %316 = math.tanh %315 : vector<8x32xf32>
    %317 = arith.mulf %312, %316 : vector<8x32xf32>
    %cst_79 = arith.constant dense<0.000000e+00> : vector<8x128xf32>
    %318 = tpu.matmul %317, %8, %cst_79 {dimension_numbers = #tpu.dot_dimension_numbers<[1], [0], [0], [1], [0, 0, 1, 1], [], []>} : vector<8x32xf32>, vector<32x128xf32>, vector<8x128xf32> -> vector<8x128xf32>
    %319 = arith.addf %318, %9 : vector<8x128xf32>
    %c7 = arith.constant 7 : index
    %c0_80 = arith.constant 0 : index
    %c0_81 = arith.constant 0 : index
    %320 = vector.load %arg8[%c7, %c0_80, %c0_81] : memref<8x8x128xf32, #tpu.memory_space<vmem>>, vector<1x8x128xf32>
    %321 = vector.shape_cast %320 : vector<1x8x128xf32> to vector<8x128xf32>
    %322 = vector.shape_cast %319 : vector<8x128xf32> to vector<1x8x128xf32>
    tpu.vector_store %arg8[%c7, %c0_80, %c0_81], %322 {strides = array<i32>} : memref<8x8x128xf32, #tpu.memory_space<vmem>>, vector<1x8x128xf32>,
    return
  }
}

</mosaic_0001>

<llo_original>
// kernel: tpu_custom_call.1
$region0: #{tpu_custom_call.1}
  #allocation0 [shape = 'u32[]', space=smem, size = 0x4, offset = 0x4, fixed_abs, tag = 'smem constant byte address 0x4 - core index']
  #allocation1 [shape = 'u32[144,128]{1,0:T(1,128)}', space=vmem, size = 0x12000, scoped, tag = 'internal scratch']
  %s0 = inlined_call_operand.hbm [shape: f32[48,128], index: 0, kind: input, shape index: {}]
  %s1 = inlined_call_operand.hbm [shape: f32[64,128], index: 1, kind: input, shape index: {}]
  %s2 = inlined_call_operand.hbm [shape: f32[128,128], index: 2, kind: input, shape index: {}]
  %s3 = inlined_call_operand.hbm [shape: f32[128,128], index: 3, kind: input, shape index: {}]
  %s4 = inlined_call_operand.hbm [shape: f32[32,128], index: 4, kind: input, shape index: {}]
  %s5 = inlined_call_operand.hbm [shape: f32[32,128], index: 5, kind: input, shape index: {}]
  %s6 = inlined_call_operand.hbm [shape: f32[32,128], index: 6, kind: input, shape index: {}]
  %s7 = inlined_call_operand.vmem [shape: f32[8,128], index: 7, kind: input, shape index: {}]
  %s8 = inlined_call_operand.hbm [shape: f32[8,8,128], index: 8, kind: output, shape index: {}]
  %s9 = sld [smem:[#allocation0]]
  $region70: #{tpu_custom_call.1} parent=0
    _
  %s11 = ssub.s32 1, %s9
  %s12 = scalar_select 0, %s11, %s9
  $region1: #{tpu_custom_call.1} parent=0
    #allocation2 [shape = 'u8[24576]{0}', space=vmem, size = 0x6000, scoped, tag = 'input window, operand 0, single buffered']
    #allocation3 [shape = 's32[1]{0}', space=sflag, size = 0x4, scoped, tag = 'scoped memory for tpu_custom_call.1']
    #allocation4 [shape = 's32[1]{0}', space=sflag, size = 0x4, scoped, tag = 'scoped memory for tpu_custom_call.1']
    #allocation5 [shape = 'u8[32768]{0}', space=vmem, size = 0x8000, scoped, tag = 'input window, operand 1, single buffered']
    #allocation6 [shape = 's32[1]{0}', space=sflag, size = 0x4, scoped, tag = 'scoped memory for tpu_custom_call.1']
    #allocation7 [shape = 'u8[65536]{0}', space=vmem, size = 0x10000, scoped, tag = 'input window, operand 2, single buffered']
    #allocation8 [shape = 'u8[65536]{0}', space=vmem, size = 0x10000, scoped, tag = 'input window, operand 3, single buffered']
    #allocation9 [shape = 's32[1]{0}', space=sflag, size = 0x4, scoped, tag = 'scoped memory for tpu_custom_call.1']
    #allocation10 [shape = 'u8[16384]{0}', space=vmem, size = 0x4000, scoped, tag = 'input window, operand 4, single buffered']
    #allocation11 [shape = 'u8[16384]{0}', space=vmem, size = 0x4000, scoped, tag = 'input window, operand 5, single buffered']
    #allocation12 [shape = 's32[1]{0}', space=sflag, size = 0x4, scoped, tag = 'scoped memory for tpu_custom_call.1']
    #allocation13 [shape = 'u8[16384]{0}', space=vmem, size = 0x4000, scoped, tag = 'input window, operand 6, single buffered']
    #allocation14 [shape = 'u8[32768]{0}', space=vmem, size = 0x8000, scoped, tag = 'output window, operand 0, single buffered']
    %13 = vsyncpa [#allocation3], 0
    %14 = vsyncpa [#allocation6], 0
    %15 = vsyncpa [#allocation9], 0
    %16 = vsyncpa [#allocation12], 0
    %17 = vsyncpa [#allocation4], 0
    // Predicated region
    $region2: #{tpu_custom_call.1} parent=1 // pred_check
      _
    $region3: #{tpu_custom_call.1} parent=1 // pred_check_branch
      %19 = sbr.rel (0) target = $region5
    $region4: #{tpu_custom_call.1} parent=1 // pred_region
      %s21 = ssub.s32 768, 768
      %22 = vsyncadd [#allocation3], %s21
      %s23 = sshll.u32 [#allocation2], 4
      %s24 = int_to_ptr.vmem [resolvable:$true] %s23
      %29 = dma.hbm_to_vmem [thread:$0]  %s0, 768, %s24, [#allocation3], 128, 128, 8
    $region5: #{tpu_custom_call.1} parent=1 // pred_fallthru
      _
    // Predicated region
    $region6: #{tpu_custom_call.1} parent=1 // pred_check
      _
    $region7: #{tpu_custom_call.1} parent=1 // pred_check_branch
      %31 = sbr.rel (0) target = $region9
    $region8: #{tpu_custom_call.1} parent=1 // pred_region
      %s33 = ssub.s32 1024, 1024
      %34 = vsyncadd [#allocation6], %s33
      %s35 = sshll.u32 [#allocation5], 4
      %s36 = int_to_ptr.vmem [resolvable:$true] %s35
      %41 = dma.hbm_to_vmem [thread:$0]  %s1, 1024, %s36, [#allocation6], 128, 128, 8
    $region9: #{tpu_custom_call.1} parent=1 // pred_fallthru
      _
    // Predicated region
    $region10: #{tpu_custom_call.1} parent=1 // pred_check
      _
    $region11: #{tpu_custom_call.1} parent=1 // pred_check_branch
      %43 = sbr.rel (0) target = $region13
    $region12: #{tpu_custom_call.1} parent=1 // pred_region
      %s45 = ssub.s32 2048, 2048
      %46 = vsyncadd [#allocation6], %s45
      %s47 = sshll.u32 [#allocation7], 4
      %s48 = int_to_ptr.vmem [resolvable:$true] %s47
      %53 = dma.hbm_to_vmem [thread:$0]  %s2, 2048, %s48, [#allocation6], 128, 128, 8
    $region13: #{tpu_custom_call.1} parent=1 // pred_fallthru
      _
    // Predicated region
    $region14: #{tpu_custom_call.1} parent=1 // pred_check
      _
    $region15: #{tpu_custom_call.1} parent=1 // pred_check_branch
      %55 = sbr.rel (0) target = $region17
    $region16: #{tpu_custom_call.1} parent=1 // pred_region
      %s57 = ssub.s32 2048, 2048
      %58 = vsyncadd [#allocation9], %s57
      %s59 = sshll.u32 [#allocation8], 4
      %s60 = int_to_ptr.vmem [resolvable:$true] %s59
      %65 = dma.hbm_to_vmem [thread:$0]  %s3, 2048, %s60, [#allocation9], 128, 128, 8
    $region17: #{tpu_custom_call.1} parent=1 // pred_fallthru
      _
    // Predicated region
    $region18: #{tpu_custom_call.1} parent=1 // pred_check
      _
    $region19: #{tpu_custom_call.1} parent=1 // pred_check_branch
      %67 = sbr.rel (0) target = $region21
    $region20: #{tpu_custom_call.1} parent=1 // pred_region
      %s69 = ssub.s32 512, 512
      %70 = vsyncadd [#allocation9], %s69
      %s71 = sshll.u32 [#allocation10], 4
      %s72 = int_to_ptr.vmem [resolvable:$true] %s71
      %77 = dma.hbm_to_vmem [thread:$0]  %s4, 512, %s72, [#allocation9], 128, 128, 8
    $region21: #{tpu_custom_call.1} parent=1 // pred_fallthru
      _
    // Predicated region
    $region22: #{tpu_custom_call.1} parent=1 // pred_check
      _
    $region23: #{tpu_custom_call.1} parent=1 // pred_check_branch
      %79 = sbr.rel (0) target = $region25
    $region24: #{tpu_custom_call.1} parent=1 // pred_region
      %s81 = ssub.s32 512, 512
      %82 = vsyncadd [#allocation12], %s81
      %s83 = sshll.u32 [#allocation11], 4
      %s84 = int_to_ptr.vmem [resolvable:$true] %s83
      %89 = dma.hbm_to_vmem [thread:$0]  %s5, 512, %s84, [#allocation12], 128, 128, 8
    $region25: #{tpu_custom_call.1} parent=1 // pred_fallthru
      _
    // Predicated region
    $region26: #{tpu_custom_call.1} parent=1 // pred_check
      _
    $region27: #{tpu_custom_call.1} parent=1 // pred_check_branch
      %91 = sbr.rel (0) target = $region29
    $region28: #{tpu_custom_call.1} parent=1 // pred_region
      %s93 = ssub.s32 512, 512
      %94 = vsyncadd [#allocation12], %s93
      %s95 = sshll.u32 [#allocation13], 4
      %s96 = int_to_ptr.vmem [resolvable:$true] %s95
      %101 = dma.hbm_to_vmem [thread:$0]  %s6, 512, %s96, [#allocation12], 128, 128, 8
    $region29: #{tpu_custom_call.1} parent=1 // pred_fallthru
      _
    // Predicated region
    $region30: #{tpu_custom_call.1} parent=1 // pred_check
      _
    $region31: #{tpu_custom_call.1} parent=1 // pred_check_branch
      %103 = sbr.rel (0) target = $region33
    $region32: #{tpu_custom_call.1} parent=1 // pred_region
      _
    $region33: #{tpu_custom_call.1} parent=1 // pred_fallthru
      _
    // Predicated region
    $region34: #{tpu_custom_call.1} parent=1 // pred_check
      _
    $region35: #{tpu_custom_call.1} parent=1 // pred_check_branch
      %105 = sbr.rel (0) target = $region37
    $region36: #{tpu_custom_call.1} parent=1 // pred_region
      %106 = dma.done [#allocation3], 768
    $region37: #{tpu_custom_call.1} parent=1 // pred_fallthru
      _
    // Predicated region
    $region38: #{tpu_custom_call.1} parent=1 // pred_check
      _
    $region39: #{tpu_custom_call.1} parent=1 // pred_check_branch
      %108 = sbr.rel (0) target = $region41
    $region40: #{tpu_custom_call.1} parent=1 // pred_region
      %109 = dma.done [#allocation6], 1024
    $region41: #{tpu_custom_call.1} parent=1 // pred_fallthru
      _
    // Predicated region
    $region42: #{tpu_custom_call.1} parent=1 // pred_check
      _
    $region43: #{tpu_custom_call.1} parent=1 // pred_check_branch
      %111 = sbr.rel (0) target = $region45
    $region44: #{tpu_custom_call.1} parent=1 // pred_region
      %112 = dma.done [#allocation6], 2048
    $region45: #{tpu_custom_call.1} parent=1 // pred_fallthru
      _
    // Predicated region
    $region46: #{tpu_custom_call.1} parent=1 // pred_check
      _
    $region47: #{tpu_custom_call.1} parent=1 // pred_check_branch
      %114 = sbr.rel (0) target = $region49
    $region48: #{tpu_custom_call.1} parent=1 // pred_region
      %115 = dma.done [#allocation9], 2048
    $region49: #{tpu_custom_call.1} parent=1 // pred_fallthru
      _
    // Predicated region
    $region50: #{tpu_custom_call.1} parent=1 // pred_check
      _
    $region51: #{tpu_custom_call.1} parent=1 // pred_check_branch
      %117 = sbr.rel (0) target = $region53
    $region52: #{tpu_custom_call.1} parent=1 // pred_region
      %118 = dma.done [#allocation9], 512
    $region53: #{tpu_custom_call.1} parent=1 // pred_fallthru
      _
    // Predicated region
    $region54: #{tpu_custom_call.1} parent=1 // pred_check
      _
    $region55: #{tpu_custom_call.1} parent=1 // pred_check_branch
      %120 = sbr.rel (0) target = $region57
    $region56: #{tpu_custom_call.1} parent=1 // pred_region
      %121 = dma.done [#allocation12], 512
    $region57: #{tpu_custom_call.1} parent=1 // pred_fallthru
      _
    // Predicated region
    $region58: #{tpu_custom_call.1} parent=1 // pred_check
      _
    $region59: #{tpu_custom_call.1} parent=1 // pred_check_branch
      %123 = sbr.rel (0) target = $region61
    $region60: #{tpu_custom_call.1} parent=1 // pred_region
      %124 = dma.done [#allocation12], 512
    $region61: #{tpu_custom_call.1} parent=1 // pred_fallthru
      _
    %v125 = vld [vmem:[#allocation2] sm:$0xff]
    %v126 = vld [vmem:[#allocation2 + $0x8] sm:$0xff]
    %v127 = vld [vmem:[#allocation2 + $0x10] sm:$0xff]
    %v128 = vld [vmem:[#allocation2 + $0x18] sm:$0xff]
    %v129 = vld [vmem:[#allocation2 + $0x20] sm:$0xff]
    %v130 = vld [vmem:[#allocation2 + $0x28] sm:$0xff]
    %v131 = vld [vmem:[#allocation7] sm:$0xff]
    %v132 = vld [vmem:[#allocation7 + $0x8] sm:$0xff]
    %v133 = vld [vmem:[#allocation7 + $0x10] sm:$0xff]
    %v134 = vld [vmem:[#allocation7 + $0x18] sm:$0xff]
    %v135 = vld [vmem:[#allocation7 + $0x20] sm:$0xff]
    %v136 = vld [vmem:[#allocation7 + $0x28] sm:$0xff]
    %v137 = vld [vmem:[#allocation7 + $0x30] sm:$0xff]
    %v138 = vld [vmem:[#allocation7 + $0x38] sm:$0xff]
    %v139 = vld [vmem:[#allocation7 + $0x40] sm:$0xff]
    %v140 = vld [vmem:[#allocation7 + $0x48] sm:$0xff]
    %v141 = vld [vmem:[#allocation7 + $0x50] sm:$0xff]
    %v142 = vld [vmem:[#allocation7 + $0x58] sm:$0xff]
    %v143 = vld [vmem:[#allocation7 + $0x60] sm:$0xff]
    %v144 = vld [vmem:[#allocation7 + $0x68] sm:$0xff]
    %v145 = vld [vmem:[#allocation7 + $0x70] sm:$0xff]
    %v146 = vld [vmem:[#allocation7 + $0x78] sm:$0xff]
    %147 = vmatprep.subr.mxu0 0.0
    %148 = vmatpush1.msra.mxu0 %v131
    %149 = vmatprep.subr.mxu0 0.0
    %150 = vmatpush1.msra.mxu0 %v132
    %151 = vmatprep.subr.mxu0 0.0
    %152 = vmatpush1.msra.mxu0 %v133
    %153 = vmatprep.subr.mxu0 0.0
    %154 = vmatpush1.msra.mxu0 %v134
    %155 = vmatprep.subr.mxu0 0.0
    %156 = vmatpush1.msra.mxu0 %v135
    %157 = vmatprep.subr.mxu0 0.0
    %158 = vmatpush1.msra.mxu0 %v136
    %159 = vmatprep.subr.mxu0 0.0
    %160 = vmatpush1.msra.mxu0 %v137
    %161 = vmatprep.subr.mxu0 0.0
    %162 = vmatpush1.msra.mxu0 %v138
    %163 = vmatprep.subr.mxu0 0.0
    %164 = vmatpush1.msra.mxu0 %v139
    %165 = vmatprep.subr.mxu0 0.0
    %166 = vmatpush1.msra.mxu0 %v140
    %167 = vmatprep.subr.mxu0 0.0
    %168 = vmatpush1.msra.mxu0 %v141
    %169 = vmatprep.subr.mxu0 0.0
    %170 = vmatpush1.msra.mxu0 %v142
    %171 = vmatprep.subr.mxu0 0.0
    %172 = vmatpush1.msra.mxu0 %v143
    %173 = vmatprep.subr.mxu0 0.0
    %174 = vmatpush1.msra.mxu0 %v144
    %175 = vmatprep.subr.mxu0 0.0
    %176 = vmatpush1.msra.mxu0 %v145
    %177 = vmatprep.subr.mxu0 0.0
    %178 = vmatpush1.msra.mxu0 %v146
    %179 = vmatprep.subr.mxu0 0.0
    %180 = vmatpush1.msra.mxu0 0.0
    %181 = vmatprep.subr.mxu0 0.0
    %182 = vmatpush1.msra.mxu0 0.0
    %183 = vmatprep.subr.mxu0 0.0
    %184 = vmatpush1.msra.mxu0 0.0
    %185 = vmatprep.subr.mxu0 0.0
    %186 = vmatpush1.msra.mxu0 0.0
    %187 = vmatprep.subr.mxu0 0.0
    %188 = vmatpush1.msra.mxu0 0.0
    %189 = vmatprep.subr.mxu0 0.0
    %190 = vmatpush1.msra.mxu0 0.0
    %191 = vmatprep.subr.mxu0 0.0
    %192 = vmatpush1.msra.mxu0 0.0
    %193 = vmatprep.subr.mxu0 0.0
    %194 = vmatpush1.msra.mxu0 0.0
    %195 = vmatprep.subr.mxu0 0.0
    %196 = vmatpush1.msra.mxu0 0.0
    %197 = vmatprep.subr.mxu0 0.0
    %198 = vmatpush1.msra.mxu0 0.0
    %199 = vmatprep.subr.mxu0 0.0
    %200 = vmatpush1.msra.mxu0 0.0
    %201 = vmatprep.subr.mxu0 0.0
    %202 = vmatpush1.msra.mxu0 0.0
    %203 = vmatprep.subr.mxu0 0.0
    %204 = vmatpush1.msra.mxu0 0.0
    %205 = vmatprep.subr.mxu0 0.0
    %206 = vmatpush1.msra.mxu0 0.0
    %207 = vmatprep.subr.mxu0 0.0
    %208 = vmatpush1.msra.mxu0 0.0
    %209 = vmatprep.subr.mxu0 0.0
    %210 = vmatpush1.msra.mxu0 0.0
    %211 = vmatprep.mubr.f32.mxu0 0.0
    %212 = vmatmul.mubr.f32.gmra.mrb[0].mxu0 %v125
    %v213 = vpop.f32.mrb[0].mxu0
    %v214 = vadd.f32 0.0, %v213
    %v215 = vpop.f32.mrb[0].mxu0
    %216 = vmatprep.mubr.f32.mxu0 0.0
    %217 = vmatmul.mubr.f32.gmra.mrb[0].mxu0 %v126
    %v218 = vpop.f32.mrb[0].mxu0
    %v219 = vadd.f32 0.0, %v218
    %v220 = vpop.f32.mrb[0].mxu0
    %221 = vmatprep.mubr.f32.mxu0 0.0
    %222 = vmatmul.mubr.f32.gmra.mrb[0].mxu0 %v127
    %v223 = vpop.f32.mrb[0].mxu0
    %v224 = vadd.f32 0.0, %v223
    %v225 = vpop.f32.mrb[0].mxu0
    %226 = vmatprep.mubr.f32.mxu0 0.0
    %227 = vmatmul.mubr.f32.gmra.mrb[0].mxu0 %v128
    %v228 = vpop.f32.mrb[0].mxu0
    %v229 = vadd.f32 0.0, %v228
    %v230 = vpop.f32.mrb[0].mxu0
    %231 = vmatprep.mubr.f32.mxu0 0.0
    %232 = vmatmul.mubr.f32.gmra.mrb[0].mxu0 %v129
    %v233 = vpop.f32.mrb[0].mxu0
    %v234 = vadd.f32 0.0, %v233
    %v235 = vpop.f32.mrb[0].mxu0
    %236 = vmatprep.mubr.f32.mxu0 0.0
    %237 = vmatmul.mubr.f32.gmra.mrb[0].mxu0 %v130
    %v238 = vpop.f32.mrb[0].mxu0
    %v239 = vadd.f32 0.0, %v238
    %v240 = vpop.f32.mrb[0].mxu0
    %241 = vdwg.mxu0
    %v242 = vld [vmem:[#allocation5] sm:$0xff]
    %v243 = vld [vmem:[#allocation5 + $0x8] sm:$0xff]
    %v244 = vld [vmem:[#allocation5 + $0x10] sm:$0xff]
    %v245 = vld [vmem:[#allocation5 + $0x18] sm:$0xff]
    %v246 = vld [vmem:[#allocation5 + $0x20] sm:$0xff]
    %v247 = vld [vmem:[#allocation5 + $0x28] sm:$0xff]
    %v248 = vld [vmem:[#allocation5 + $0x30] sm:$0xff]
    %v249 = vld [vmem:[#allocation5 + $0x38] sm:$0xff]
    %v250 = vld [vmem:[#allocation8] sm:$0xff]
    %v251 = vld [vmem:[#allocation8 + $0x8] sm:$0xff]
    %v252 = vld [vmem:[#allocation8 + $0x10] sm:$0xff]
    %v253 = vld [vmem:[#allocation8 + $0x18] sm:$0xff]
    %v254 = vld [vmem:[#allocation8 + $0x20] sm:$0xff]
    %v255 = vld [vmem:[#allocation8 + $0x28] sm:$0xff]
    %v256 = vld [vmem:[#allocation8 + $0x30] sm:$0xff]
    %v257 = vld [vmem:[#allocation8 + $0x38] sm:$0xff]
    %v258 = vld [vmem:[#allocation8 + $0x40] sm:$0xff]
    %v259 = vld [vmem:[#allocation8 + $0x48] sm:$0xff]
    %v260 = vld [vmem:[#allocation8 + $0x50] sm:$0xff]
    %v261 = vld [vmem:[#allocation8 + $0x58] sm:$0xff]
    %v262 = vld [vmem:[#allocation8 + $0x60] sm:$0xff]
    %v263 = vld [vmem:[#allocation8 + $0x68] sm:$0xff]
    %v264 = vld [vmem:[#allocation8 + $0x70] sm:$0xff]
    %v265 = vld [vmem:[#allocation8 + $0x78] sm:$0xff]
    %266 = vmatprep.subr.mxu0 0.0
    %267 = vmatpush1.msra.mxu0 %v250
    %268 = vmatprep.subr.mxu0 0.0
    %269 = vmatpush1.msra.mxu0 %v251
    %270 = vmatprep.subr.mxu0 0.0
    %271 = vmatpush1.msra.mxu0 %v252
    %272 = vmatprep.subr.mxu0 0.0
    %273 = vmatpush1.msra.mxu0 %v253
    %274 = vmatprep.subr.mxu0 0.0
    %275 = vmatpush1.msra.mxu0 %v254
    %276 = vmatprep.subr.mxu0 0.0
    %277 = vmatpush1.msra.mxu0 %v255
    %278 = vmatprep.subr.mxu0 0.0
    %279 = vmatpush1.msra.mxu0 %v256
    %280 = vmatprep.subr.mxu0 0.0
    %281 = vmatpush1.msra.mxu0 %v257
    %282 = vmatprep.subr.mxu0 0.0
    %283 = vmatpush1.msra.mxu0 %v258
    %284 = vmatprep.subr.mxu0 0.0
    %285 = vmatpush1.msra.mxu0 %v259
    %286 = vmatprep.subr.mxu0 0.0
    %287 = vmatpush1.msra.mxu0 %v260
    %288 = vmatprep.subr.mxu0 0.0
    %289 = vmatpush1.msra.mxu0 %v261
    %290 = vmatprep.subr.mxu0 0.0
    %291 = vmatpush1.msra.mxu0 %v262
    %292 = vmatprep.subr.mxu0 0.0
    %293 = vmatpush1.msra.mxu0 %v263
    %294 = vmatprep.subr.mxu0 0.0
    %295 = vmatpush1.msra.mxu0 %v264
    %296 = vmatprep.subr.mxu0 0.0
    %297 = vmatpush1.msra.mxu0 %v265
    %298 = vmatprep.subr.mxu0 0.0
    %299 = vmatpush1.msra.mxu0 0.0
    %300 = vmatprep.subr.mxu0 0.0
    %301 = vmatpush1.msra.mxu0 0.0
    %302 = vmatprep.subr.mxu0 0.0
    %303 = vmatpush1.msra.mxu0 0.0
    %304 = vmatprep.subr.mxu0 0.0
    %305 = vmatpush1.msra.mxu0 0.0
    %306 = vmatprep.subr.mxu0 0.0
    %307 = vmatpush1.msra.mxu0 0.0
    %308 = vmatprep.subr.mxu0 0.0
    %309 = vmatpush1.msra.mxu0 0.0
    %310 = vmatprep.subr.mxu0 0.0
    %311 = vmatpush1.msra.mxu0 0.0
    %312 = vmatprep.subr.mxu0 0.0
    %313 = vmatpush1.msra.mxu0 0.0
    %314 = vmatprep.subr.mxu0 0.0
    %315 = vmatpush1.msra.mxu0 0.0
    %316 = vmatprep.subr.mxu0 0.0
    %317 = vmatpush1.msra.mxu0 0.0
    %318 = vmatprep.subr.mxu0 0.0
    %319 = vmatpush1.msra.mxu0 0.0
    %320 = vmatprep.subr.mxu0 0.0
    %321 = vmatpush1.msra.mxu0 0.0
    %322 = vmatprep.subr.mxu0 0.0
    %323 = vmatpush1.msra.mxu0 0.0
    %324 = vmatprep.subr.mxu0 0.0
    %325 = vmatpush1.msra.mxu0 0.0
    %326 = vmatprep.subr.mxu0 0.0
    %327 = vmatpush1.msra.mxu0 0.0
    %328 = vmatprep.subr.mxu0 0.0
    %329 = vmatpush1.msra.mxu0 0.0
    %330 = vmatprep.mubr.f32.mxu0 0.0
    %331 = vmatmul.mubr.f32.gmra.mrb[0].mxu0 %v242
    %v332 = vpop.f32.mrb[0].mxu0
    %v333 = vadd.f32 0.0, %v332
    %v334 = vpop.f32.mrb[0].mxu0
    %335 = vmatprep.mubr.f32.mxu0 0.0
    %336 = vmatmul.mubr.f32.gmra.mrb[0].mxu0 %v243
    %v337 = vpop.f32.mrb[0].mxu0
    %v338 = vpop.f32.mrb[0].mxu0
    %339 = vmatprep.mubr.f32.mxu0 0.0
    %340 = vmatmul.mubr.f32.gmra.mrb[0].mxu0 %v244
    %v341 = vpop.f32.mrb[0].mxu0
    %v342 = vpop.f32.mrb[0].mxu0
    %343 = vmatprep.mubr.f32.mxu0 0.0
    %344 = vmatmul.mubr.f32.gmra.mrb[0].mxu0 %v245
    %v345 = vpop.f32.mrb[0].mxu0
    %v346 = vadd.f32 0.0, %v345
    %v347 = vpop.f32.mrb[0].mxu0
    %348 = vmatprep.mubr.f32.mxu0 0.0
    %349 = vmatmul.mubr.f32.gmra.mrb[0].mxu0 %v246
    %v350 = vpop.f32.mrb[0].mxu0
    %v351 = vadd.f32 0.0, %v350
    %v352 = vpop.f32.mrb[0].mxu0
    %353 = vmatprep.mubr.f32.mxu0 0.0
    %354 = vmatmul.mubr.f32.gmra.mrb[0].mxu0 %v247
    %v355 = vpop.f32.mrb[0].mxu0
    %v356 = vpop.f32.mrb[0].mxu0
    %357 = vmatprep.mubr.f32.mxu0 0.0
    %358 = vmatmul.mubr.f32.gmra.mrb[0].mxu0 %v248
    %v359 = vpop.f32.mrb[0].mxu0
    %v360 = vadd.f32 0.0, %v359
    %v361 = vpop.f32.mrb[0].mxu0
    %362 = vmatprep.mubr.f32.mxu0 0.0
    %363 = vmatmul.mubr.f32.gmra.mrb[0].mxu0 %v249
    %v364 = vpop.f32.mrb[0].mxu0
    %v365 = vpop.f32.mrb[0].mxu0
    %366 = vdwg.mxu0
    %v367 = vld [vmem:[#allocation10] sm:$0xff]
    %v368 = vld [vmem:[#allocation10 + $0x8] sm:$0xff]
    %v369 = vld [vmem:[#allocation10 + $0x10] sm:$0xff]
    %v370 = vld [vmem:[#allocation10 + $0x18] sm:$0xff]
    %v371 = vld [vmem:[#allocation11] sm:$0xff]
    %v372 = vld [vmem:[#allocation11 + $0x8] sm:$0xff]
    %v373 = vld [vmem:[#allocation11 + $0x10] sm:$0xff]
    %v374 = vld [vmem:[#allocation11 + $0x18] sm:$0xff]
    %v375 = vld [vmem:[#allocation13] sm:$0xff]
    %v376 = vld [vmem:[#allocation13 + $0x8] sm:$0xff]
    %v377 = vld [vmem:[#allocation13 + $0x10] sm:$0xff]
    %v378 = vld [vmem:[#allocation13 + $0x18] sm:$0xff]
    %v379 = vld [vmem:[%s7] sm:$0xff]
    %v380 = vlaneseq
    %v381 = vand.u32 %v380, 127
    %vm382 = vcmask 261120
    %v384 = vsel %vm382, 0.0, 0
    %386 = vmatprep.subr.mxu0 0.0
    %387 = vmatpush1.msra.mxu0 %v367
    %388 = vmatprep.subr.mxu0 0.0
    %389 = vmatpush1.msra.mxu0 %v368
    %390 = vmatprep.subr.mxu0 0.0
    %391 = vmatpush1.msra.mxu0 %v369
    %392 = vmatprep.subr.mxu0 0.0
    %393 = vmatpush1.msra.mxu0 %v370
    %394 = vmatprep.subr.mxu0 0.0
    %395 = vmatpush1.msra.mxu0 0.0
    %396 = vmatprep.subr.mxu0 0.0
    %397 = vmatpush1.msra.mxu0 0.0
    %398 = vmatprep.subr.mxu0 0.0
    %399 = vmatpush1.msra.mxu0 0.0
    %400 = vmatprep.subr.mxu0 0.0
    %401 = vmatpush1.msra.mxu0 0.0
    %402 = vmatprep.subr.mxu0 0.0
    %403 = vmatpush1.msra.mxu0 0.0
    %404 = vmatprep.subr.mxu0 0.0
    %405 = vmatpush1.msra.mxu0 0.0
    %406 = vmatprep.subr.mxu0 0.0
    %407 = vmatpush1.msra.mxu0 0.0
    %408 = vmatprep.subr.mxu0 0.0
    %409 = vmatpush1.msra.mxu0 0.0
    %410 = vmatprep.subr.mxu0 0.0
    %411 = vmatpush1.msra.mxu0 0.0
    %412 = vmatprep.subr.mxu0 0.0
    %413 = vmatpush1.msra.mxu0 0.0
    %414 = vmatprep.subr.mxu0 0.0
    %415 = vmatpush1.msra.mxu0 0.0
    %416 = vmatprep.subr.mxu0 0.0
    %417 = vmatpush1.msra.mxu0 0.0
    %418 = vmatprep.subr.mxu0 0.0
    %419 = vmatpush1.msra.mxu0 0.0
    %420 = vmatprep.subr.mxu0 0.0
    %421 = vmatpush1.msra.mxu0 0.0
    %422 = vmatprep.subr.mxu0 0.0
    %423 = vmatpush1.msra.mxu0 0.0
    %424 = vmatprep.subr.mxu0 0.0
    %425 = vmatpush1.msra.mxu0 0.0
    %426 = vmatprep.subr.mxu0 0.0
    %427 = vmatpush1.msra.mxu0 0.0
    %428 = vmatprep.subr.mxu0 0.0
    %429 = vmatpush1.msra.mxu0 0.0
    %430 = vmatprep.subr.mxu0 0.0
    %431 = vmatpush1.msra.mxu0 0.0
    %432 = vmatprep.subr.mxu0 0.0
    %433 = vmatpush1.msra.mxu0 0.0
    %434 = vmatprep.subr.mxu0 0.0
    %435 = vmatpush1.msra.mxu0 0.0
    %436 = vmatprep.subr.mxu0 0.0
    %437 = vmatpush1.msra.mxu0 0.0
    %438 = vmatprep.subr.mxu0 0.0
    %439 = vmatpush1.msra.mxu0 0.0
    %440 = vmatprep.subr.mxu0 0.0
    %441 = vmatpush1.msra.mxu0 0.0
    %442 = vmatprep.subr.mxu0 0.0
    %443 = vmatpush1.msra.mxu0 0.0
    %444 = vmatprep.subr.mxu0 0.0
    %445 = vmatpush1.msra.mxu0 0.0
    %446 = vmatprep.subr.mxu0 0.0
    %447 = vmatpush1.msra.mxu0 0.0
    %448 = vmatprep.subr.mxu0 0.0
    %449 = vmatpush1.msra.mxu0 0.0
    %450 = vmatprep.mubr.f32.mxu0 0.0
    %451 = vmatmul.mubr.f32.gmra.mrb[0].mxu0 %v384
    %v452 = vpop.f32.mrb[0].mxu0
    %v453 = vadd.f32 0.0, %v452
    %v454 = vpop.f32.mrb[0].mxu0
    %455 = vdwg.mxu0
    %v456 = vadd.f32 %v214, %v453
    %v457 = vxor.u32 %v456, 2147483648
    %v458 = vmul.f32 %v457, 1.442695
    %v459 = vpow.pop %v458
    %v460 = vadd.f32 %v459, 1.0
    %v461 = vrcp.pop %v460
    %v462 = vmul.f32 1.0, %v461
    %v463 = vtanh.pop %v456
    %v464 = vmul.f32 %v462, 0.0
    %466 = vrot.lane.b32.xlu0 %v463, 64
    %v467 = vpop.permute.xlu0 %466
    %v469 = vmul.f32 %v462, %v467
    %471 = vrot.lane.b32.xlu0 %v469, 32
    %v472 = vpop.permute.xlu0 %471
    %v474 = vadd.f32 %v464, %v472
    %v475 = vtanh.pop %v474
    %477 = vrot.lane.b32.xlu0 %v475, 64
    %v478 = vpop.permute.xlu0 %477
    %v480 = vmul.f32 %v462, %v478
    %482 = vrot.lane.b32.xlu0 %v480, 32
    %v483 = vpop.permute.xlu0 %482
    %v484 = vsel %vm382, %v483, 0
    %486 = vmatprep.subr.mxu0 0.0
    %487 = vmatpush1.msra.mxu0 %v367
    %488 = vmatprep.subr.mxu0 0.0
    %489 = vmatpush1.msra.mxu0 %v368
    %490 = vmatprep.subr.mxu0 0.0
    %491 = vmatpush1.msra.mxu0 %v369
    %492 = vmatprep.subr.mxu0 0.0
    %493 = vmatpush1.msra.mxu0 %v370
    %494 = vmatprep.subr.mxu0 0.0
    %495 = vmatpush1.msra.mxu0 0.0
    %496 = vmatprep.subr.mxu0 0.0
    %497 = vmatpush1.msra.mxu0 0.0
    %498 = vmatprep.subr.mxu0 0.0
    %499 = vmatpush1.msra.mxu0 0.0
    %500 = vmatprep.subr.mxu0 0.0
    %501 = vmatpush1.msra.mxu0 0.0
    %502 = vmatprep.subr.mxu0 0.0
    %503 = vmatpush1.msra.mxu0 0.0
    %504 = vmatprep.subr.mxu0 0.0
    %505 = vmatpush1.msra.mxu0 0.0
    %506 = vmatprep.subr.mxu0 0.0
    %507 = vmatpush1.msra.mxu0 0.0
    %508 = vmatprep.subr.mxu0 0.0
    %509 = vmatpush1.msra.mxu0 0.0
    %510 = vmatprep.subr.mxu0 0.0
    %511 = vmatpush1.msra.mxu0 0.0
    %512 = vmatprep.subr.mxu0 0.0
    %513 = vmatpush1.msra.mxu0 0.0
    %514 = vmatprep.subr.mxu0 0.0
    %515 = vmatpush1.msra.mxu0 0.0
    %516 = vmatprep.subr.mxu0 0.0
    %517 = vmatpush1.msra.mxu0 0.0
    %518 = vmatprep.subr.mxu0 0.0
    %519 = vmatpush1.msra.mxu0 0.0
    %520 = vmatprep.subr.mxu0 0.0
    %521 = vmatpush1.msra.mxu0 0.0
    %522 = vmatprep.subr.mxu0 0.0
    %523 = vmatpush1.msra.mxu0 0.0
    %524 = vmatprep.subr.mxu0 0.0
    %525 = vmatpush1.msra.mxu0 0.0
    %526 = vmatprep.subr.mxu0 0.0
    %527 = vmatpush1.msra.mxu0 0.0
    %528 = vmatprep.subr.mxu0 0.0
    %529 = vmatpush1.msra.mxu0 0.0
    %530 = vmatprep.subr.mxu0 0.0
    %531 = vmatpush1.msra.mxu0 0.0
    %532 = vmatprep.subr.mxu0 0.0
    %533 = vmatpush1.msra.mxu0 0.0
    %534 = vmatprep.subr.mxu0 0.0
    %535 = vmatpush1.msra.mxu0 0.0
    %536 = vmatprep.subr.mxu0 0.0
    %537 = vmatpush1.msra.mxu0 0.0
    %538 = vmatprep.subr.mxu0 0.0
    %539 = vmatpush1.msra.mxu0 0.0
    %540 = vmatprep.subr.mxu0 0.0
    %541 = vmatpush1.msra.mxu0 0.0
    %542 = vmatprep.subr.mxu0 0.0
    %543 = vmatpush1.msra.mxu0 0.0
    %544 = vmatprep.subr.mxu0 0.0
    %545 = vmatpush1.msra.mxu0 0.0
    %546 = vmatprep.subr.mxu0 0.0
    %547 = vmatpush1.msra.mxu0 0.0
    %548 = vmatprep.subr.mxu0 0.0
    %549 = vmatpush1.msra.mxu0 0.0
    %550 = vmatprep.mubr.f32.mxu0 0.0
    %551 = vmatmul.mubr.f32.gmra.mrb[0].mxu0 %v484
    %v552 = vpop.f32.mrb[0].mxu0
    %v553 = vadd.f32 0.0, %v552
    %v554 = vpop.f32.mrb[0].mxu0
    %555 = vdwg.mxu0
    %v556 = vadd.f32 %v219, %v553
    %v557 = vxor.u32 %v556, 2147483648
    %v558 = vmul.f32 %v557, 1.442695
    %v559 = vpow.pop %v558
    %v560 = vadd.f32 %v559, 1.0
    %v561 = vrcp.pop %v560
    %v562 = vmul.f32 1.0, %v561
    %v563 = vtanh.pop %v556
    %v564 = vmul.f32 %v562, %v474
    %566 = vrot.lane.b32.xlu0 %v563, 64
    %v567 = vpop.permute.xlu0 %566
    %v569 = vmul.f32 %v562, %v567
    %571 = vrot.lane.b32.xlu0 %v569, 32
    %v572 = vpop.permute.xlu0 %571
    %v574 = vadd.f32 %v564, %v572
    %v575 = vtanh.pop %v574
    %577 = vrot.lane.b32.xlu0 %v575, 64
    %v578 = vpop.permute.xlu0 %577
    %v580 = vmul.f32 %v562, %v578
    %582 = vrot.lane.b32.xlu0 %v580, 32
    %v583 = vpop.permute.xlu0 %582
    %v584 = vsel %vm382, %v583, 0
    %586 = vmatprep.subr.mxu0 0.0
    %587 = vmatpush1.msra.mxu0 %v367
    %588 = vmatprep.subr.mxu0 0.0
    %589 = vmatpush1.msra.mxu0 %v368
    %590 = vmatprep.subr.mxu0 0.0
    %591 = vmatpush1.msra.mxu0 %v369
    %592 = vmatprep.subr.mxu0 0.0
    %593 = vmatpush1.msra.mxu0 %v370
    %594 = vmatprep.subr.mxu0 0.0
    %595 = vmatpush1.msra.mxu0 0.0
    %596 = vmatprep.subr.mxu0 0.0
    %597 = vmatpush1.msra.mxu0 0.0
    %598 = vmatprep.subr.mxu0 0.0
    %599 = vmatpush1.msra.mxu0 0.0
    %600 = vmatprep.subr.mxu0 0.0
    %601 = vmatpush1.msra.mxu0 0.0
    %602 = vmatprep.subr.mxu0 0.0
    %603 = vmatpush1.msra.mxu0 0.0
    %604 = vmatprep.subr.mxu0 0.0
    %605 = vmatpush1.msra.mxu0 0.0
    %606 = vmatprep.subr.mxu0 0.0
    %607 = vmatpush1.msra.mxu0 0.0
    %608 = vmatprep.subr.mxu0 0.0
    %609 = vmatpush1.msra.mxu0 0.0
    %610 = vmatprep.subr.mxu0 0.0
    %611 = vmatpush1.msra.mxu0 0.0
    %612 = vmatprep.subr.mxu0 0.0
    %613 = vmatpush1.msra.mxu0 0.0
    %614 = vmatprep.subr.mxu0 0.0
    %615 = vmatpush1.msra.mxu0 0.0
    %616 = vmatprep.subr.mxu0 0.0
    %617 = vmatpush1.msra.mxu0 0.0
    %618 = vmatprep.subr.mxu0 0.0
    %619 = vmatpush1.msra.mxu0 0.0
    %620 = vmatprep.subr.mxu0 0.0
    %621 = vmatpush1.msra.mxu0 0.0
    %622 = vmatprep.subr.mxu0 0.0
    %623 = vmatpush1.msra.mxu0 0.0
    %624 = vmatprep.subr.mxu0 0.0
    %625 = vmatpush1.msra.mxu0 0.0
    %626 = vmatprep.subr.mxu0 0.0
    %627 = vmatpush1.msra.mxu0 0.0
    %628 = vmatprep.subr.mxu0 0.0
    %629 = vmatpush1.msra.mxu0 0.0
    %630 = vmatprep.subr.mxu0 0.0
    %631 = vmatpush1.msra.mxu0 0.0
    %632 = vmatprep.subr.mxu0 0.0
    %633 = vmatpush1.msra.mxu0 0.0
    %634 = vmatprep.subr.mxu0 0.0
    %635 = vmatpush1.msra.mxu0 0.0
    %636 = vmatprep.subr.mxu0 0.0
    %637 = vmatpush1.msra.mxu0 0.0
    %638 = vmatprep.subr.mxu0 0.0
    %639 = vmatpush1.msra.mxu0 0.0
    %640 = vmatprep.subr.mxu0 0.0
    %641 = vmatpush1.msra.mxu0 0.0
    %642 = vmatprep.subr.mxu0 0.0
    %643 = vmatpush1.msra.mxu0 0.0
    %644 = vmatprep.subr.mxu0 0.0
    %645 = vmatpush1.msra.mxu0 0.0
    %646 = vmatprep.subr.mxu0 0.0
    %647 = vmatpush1.msra.mxu0 0.0
    %648 = vmatprep.subr.mxu0 0.0
    %649 = vmatpush1.msra.mxu0 0.0
    %650 = vmatprep.mubr.f32.mxu0 0.0
    %651 = vmatmul.mubr.f32.gmra.mrb[0].mxu0 %v584
    %v652 = vpop.f32.mrb[0].mxu0
    %v653 = vadd.f32 0.0, %v652
    %v654 = vpop.f32.mrb[0].mxu0
    %655 = vdwg.mxu0
    %v656 = vadd.f32 %v224, %v653
    %v657 = vxor.u32 %v656, 2147483648
    %v658 = vmul.f32 %v657, 1.442695
    %v659 = vpow.pop %v658
    %v660 = vadd.f32 %v659, 1.0
    %v661 = vrcp.pop %v660
    %v662 = vmul.f32 1.0, %v661
    %v663 = vtanh.pop %v656
    %v664 = vmul.f32 %v662, %v574
    %666 = vrot.lane.b32.xlu0 %v663, 64
    %v667 = vpop.permute.xlu0 %666
    %v669 = vmul.f32 %v662, %v667
    %671 = vrot.lane.b32.xlu0 %v669, 32
    %v672 = vpop.permute.xlu0 %671
    %v674 = vadd.f32 %v664, %v672
    %v675 = vtanh.pop %v674
    %677 = vrot.lane.b32.xlu0 %v675, 64
    %v678 = vpop.permute.xlu0 %677
    %v680 = vmul.f32 %v662, %v678
    %682 = vrot.lane.b32.xlu0 %v680, 32
    %v683 = vpop.permute.xlu0 %682
    %v684 = vsel %vm382, %v683, 0
    %686 = vmatprep.subr.mxu0 0.0
    %687 = vmatpush1.msra.mxu0 %v367
    %688 = vmatprep.subr.mxu0 0.0
    %689 = vmatpush1.msra.mxu0 %v368
    %690 = vmatprep.subr.mxu0 0.0
    %691 = vmatpush1.msra.mxu0 %v369
    %692 = vmatprep.subr.mxu0 0.0
    %693 = vmatpush1.msra.mxu0 %v370
    %694 = vmatprep.subr.mxu0 0.0
    %695 = vmatpush1.msra.mxu0 0.0
    %696 = vmatprep.subr.mxu0 0.0
    %697 = vmatpush1.msra.mxu0 0.0
    %698 = vmatprep.subr.mxu0 0.0
    %699 = vmatpush1.msra.mxu0 0.0
    %700 = vmatprep.subr.mxu0 0.0
    %701 = vmatpush1.msra.mxu0 0.0
    %702 = vmatprep.subr.mxu0 0.0
    %703 = vmatpush1.msra.mxu0 0.0
    %704 = vmatprep.subr.mxu0 0.0
    %705 = vmatpush1.msra.mxu0 0.0
    %706 = vmatprep.subr.mxu0 0.0
    %707 = vmatpush1.msra.mxu0 0.0
    %708 = vmatprep.subr.mxu0 0.0
    %709 = vmatpush1.msra.mxu0 0.0
    %710 = vmatprep.subr.mxu0 0.0
    %711 = vmatpush1.msra.mxu0 0.0
    %712 = vmatprep.subr.mxu0 0.0
    %713 = vmatpush1.msra.mxu0 0.0
    %714 = vmatprep.subr.mxu0 0.0
    %715 = vmatpush1.msra.mxu0 0.0
    %716 = vmatprep.subr.mxu0 0.0
    %717 = vmatpush1.msra.mxu0 0.0
    %718 = vmatprep.subr.mxu0 0.0
    %719 = vmatpush1.msra.mxu0 0.0
    %720 = vmatprep.subr.mxu0 0.0
    %721 = vmatpush1.msra.mxu0 0.0
    %722 = vmatprep.subr.mxu0 0.0
    %723 = vmatpush1.msra.mxu0 0.0
    %724 = vmatprep.subr.mxu0 0.0
    %725 = vmatpush1.msra.mxu0 0.0
    %726 = vmatprep.subr.mxu0 0.0
    %727 = vmatpush1.msra.mxu0 0.0
    %728 = vmatprep.subr.mxu0 0.0
    %729 = vmatpush1.msra.mxu0 0.0
    %730 = vmatprep.subr.mxu0 0.0
    %731 = vmatpush1.msra.mxu0 0.0
    %732 = vmatprep.subr.mxu0 0.0
    %733 = vmatpush1.msra.mxu0 0.0
    %734 = vmatprep.subr.mxu0 0.0
    %735 = vmatpush1.msra.mxu0 0.0
    %736 = vmatprep.subr.mxu0 0.0
    %737 = vmatpush1.msra.mxu0 0.0
    %738 = vmatprep.subr.mxu0 0.0
    %739 = vmatpush1.msra.mxu0 0.0
    %740 = vmatprep.subr.mxu0 0.0
    %741 = vmatpush1.msra.mxu0 0.0
    %742 = vmatprep.subr.mxu0 0.0
    %743 = vmatpush1.msra.mxu0 0.0
    %744 = vmatprep.subr.mxu0 0.0
    %745 = vmatpush1.msra.mxu0 0.0
    %746 = vmatprep.subr.mxu0 0.0
    %747 = vmatpush1.msra.mxu0 0.0
    %748 = vmatprep.subr.mxu0 0.0
    %749 = vmatpush1.msra.mxu0 0.0
    %750 = vmatprep.mubr.f32.mxu0 0.0
    %751 = vmatmul.mubr.f32.gmra.mrb[0].mxu0 %v684
    %v752 = vpop.f32.mrb[0].mxu0
    %v753 = vadd.f32 0.0, %v752
    %v754 = vpop.f32.mrb[0].mxu0
    %755 = vdwg.mxu0
    %v756 = vadd.f32 %v229, %v753
    %v757 = vxor.u32 %v756, 2147483648
    %v758 = vmul.f32 %v757, 1.442695
    %v759 = vpow.pop %v758
    %v760 = vadd.f32 %v759, 1.0
    %v761 = vrcp.pop %v760
    %v762 = vmul.f32 1.0, %v761
    %v763 = vtanh.pop %v756
    %v764 = vmul.f32 %v762, %v674
    %766 = vrot.lane.b32.xlu0 %v763, 64
    %v767 = vpop.permute.xlu0 %766
    %v769 = vmul.f32 %v762, %v767
    %771 = vrot.lane.b32.xlu0 %v769, 32
    %v772 = vpop.permute.xlu0 %771
    %v774 = vadd.f32 %v764, %v772
    %v775 = vtanh.pop %v774
    %777 = vrot.lane.b32.xlu0 %v775, 64
    %v778 = vpop.permute.xlu0 %777
    %v780 = vmul.f32 %v762, %v778
    %782 = vrot.lane.b32.xlu0 %v780, 32
    %v783 = vpop.permute.xlu0 %782
    %v784 = vsel %vm382, %v783, 0
    %786 = vmatprep.subr.mxu0 0.0
    %787 = vmatpush1.msra.mxu0 %v367
    %788 = vmatprep.subr.mxu0 0.0
    %789 = vmatpush1.msra.mxu0 %v368
    %790 = vmatprep.subr.mxu0 0.0
    %791 = vmatpush1.msra.mxu0 %v369
    %792 = vmatprep.subr.mxu0 0.0
    %793 = vmatpush1.msra.mxu0 %v370
    %794 = vmatprep.subr.mxu0 0.0
    %795 = vmatpush1.msra.mxu0 0.0
    %796 = vmatprep.subr.mxu0 0.0
    %797 = vmatpush1.msra.mxu0 0.0
    %798 = vmatprep.subr.mxu0 0.0
    %799 = vmatpush1.msra.mxu0 0.0
    %800 = vmatprep.subr.mxu0 0.0
    %801 = vmatpush1.msra.mxu0 0.0
    %802 = vmatprep.subr.mxu0 0.0
    %803 = vmatpush1.msra.mxu0 0.0
    %804 = vmatprep.subr.mxu0 0.0
    %805 = vmatpush1.msra.mxu0 0.0
    %806 = vmatprep.subr.mxu0 0.0
    %807 = vmatpush1.msra.mxu0 0.0
    %808 = vmatprep.subr.mxu0 0.0
    %809 = vmatpush1.msra.mxu0 0.0
    %810 = vmatprep.subr.mxu0 0.0
    %811 = vmatpush1.msra.mxu0 0.0
    %812 = vmatprep.subr.mxu0 0.0
    %813 = vmatpush1.msra.mxu0 0.0
    %814 = vmatprep.subr.mxu0 0.0
    %815 = vmatpush1.msra.mxu0 0.0
    %816 = vmatprep.subr.mxu0 0.0
    %817 = vmatpush1.msra.mxu0 0.0
    %818 = vmatprep.subr.mxu0 0.0
    %819 = vmatpush1.msra.mxu0 0.0
    %820 = vmatprep.subr.mxu0 0.0
    %821 = vmatpush1.msra.mxu0 0.0
    %822 = vmatprep.subr.mxu0 0.0
    %823 = vmatpush1.msra.mxu0 0.0
    %824 = vmatprep.subr.mxu0 0.0
    %825 = vmatpush1.msra.mxu0 0.0
    %826 = vmatprep.subr.mxu0 0.0
    %827 = vmatpush1.msra.mxu0 0.0
    %828 = vmatprep.subr.mxu0 0.0
    %829 = vmatpush1.msra.mxu0 0.0
    %830 = vmatprep.subr.mxu0 0.0
    %831 = vmatpush1.msra.mxu0 0.0
    %832 = vmatprep.subr.mxu0 0.0
    %833 = vmatpush1.msra.mxu0 0.0
    %834 = vmatprep.subr.mxu0 0.0
    %835 = vmatpush1.msra.mxu0 0.0
    %836 = vmatprep.subr.mxu0 0.0
    %837 = vmatpush1.msra.mxu0 0.0
    %838 = vmatprep.subr.mxu0 0.0
    %839 = vmatpush1.msra.mxu0 0.0
    %840 = vmatprep.subr.mxu0 0.0
    %841 = vmatpush1.msra.mxu0 0.0
    %842 = vmatprep.subr.mxu0 0.0
    %843 = vmatpush1.msra.mxu0 0.0
    %844 = vmatprep.subr.mxu0 0.0
    %845 = vmatpush1.msra.mxu0 0.0
    %846 = vmatprep.subr.mxu0 0.0
    %847 = vmatpush1.msra.mxu0 0.0
    %848 = vmatprep.subr.mxu0 0.0
    %849 = vmatpush1.msra.mxu0 0.0
    %850 = vmatprep.mubr.f32.mxu0 0.0
    %851 = vmatmul.mubr.f32.gmra.mrb[0].mxu0 %v784
    %v852 = vpop.f32.mrb[0].mxu0
    %v853 = vadd.f32 0.0, %v852
    %v854 = vpop.f32.mrb[0].mxu0
    %855 = vdwg.mxu0
    %v856 = vadd.f32 %v234, %v853
    %v857 = vxor.u32 %v856, 2147483648
    %v858 = vmul.f32 %v857, 1.442695
    %v859 = vpow.pop %v858
    %v860 = vadd.f32 %v859, 1.0
    %v861 = vrcp.pop %v860
    %v862 = vmul.f32 1.0, %v861
    %v863 = vtanh.pop %v856
    %v864 = vmul.f32 %v862, %v774
    %866 = vrot.lane.b32.xlu0 %v863, 64
    %v867 = vpop.permute.xlu0 %866
    %v869 = vmul.f32 %v862, %v867
    %871 = vrot.lane.b32.xlu0 %v869, 32
    %v872 = vpop.permute.xlu0 %871
    %v874 = vadd.f32 %v864, %v872
    %v875 = vtanh.pop %v874
    %877 = vrot.lane.b32.xlu0 %v875, 64
    %v878 = vpop.permute.xlu0 %877
    %v880 = vmul.f32 %v862, %v878
    %882 = vrot.lane.b32.xlu0 %v880, 32
    %v883 = vpop.permute.xlu0 %882
    %v884 = vsel %vm382, %v883, 0
    %886 = vmatprep.subr.mxu0 0.0
    %887 = vmatpush1.msra.mxu0 %v367
    %888 = vmatprep.subr.mxu0 0.0
    %889 = vmatpush1.msra.mxu0 %v368
    %890 = vmatprep.subr.mxu0 0.0
    %891 = vmatpush1.msra.mxu0 %v369
    %892 = vmatprep.subr.mxu0 0.0
    %893 = vmatpush1.msra.mxu0 %v370
    %894 = vmatprep.subr.mxu0 0.0
    %895 = vmatpush1.msra.mxu0 0.0
    %896 = vmatprep.subr.mxu0 0.0
    %897 = vmatpush1.msra.mxu0 0.0
    %898 = vmatprep.subr.mxu0 0.0
    %899 = vmatpush1.msra.mxu0 0.0
    %900 = vmatprep.subr.mxu0 0.0
    %901 = vmatpush1.msra.mxu0 0.0
    %902 = vmatprep.subr.mxu0 0.0
    %903 = vmatpush1.msra.mxu0 0.0
    %904 = vmatprep.subr.mxu0 0.0
    %905 = vmatpush1.msra.mxu0 0.0
    %906 = vmatprep.subr.mxu0 0.0
    %907 = vmatpush1.msra.mxu0 0.0
    %908 = vmatprep.subr.mxu0 0.0
    %909 = vmatpush1.msra.mxu0 0.0
    %910 = vmatprep.subr.mxu0 0.0
    %911 = vmatpush1.msra.mxu0 0.0
    %912 = vmatprep.subr.mxu0 0.0
    %913 = vmatpush1.msra.mxu0 0.0
    %914 = vmatprep.subr.mxu0 0.0
    %915 = vmatpush1.msra.mxu0 0.0
    %916 = vmatprep.subr.mxu0 0.0
    %917 = vmatpush1.msra.mxu0 0.0
    %918 = vmatprep.subr.mxu0 0.0
    %919 = vmatpush1.msra.mxu0 0.0
    %920 = vmatprep.subr.mxu0 0.0
    %921 = vmatpush1.msra.mxu0 0.0
    %922 = vmatprep.subr.mxu0 0.0
    %923 = vmatpush1.msra.mxu0 0.0
    %924 = vmatprep.subr.mxu0 0.0
    %925 = vmatpush1.msra.mxu0 0.0
    %926 = vmatprep.subr.mxu0 0.0
    %927 = vmatpush1.msra.mxu0 0.0
    %928 = vmatprep.subr.mxu0 0.0
    %929 = vmatpush1.msra.mxu0 0.0
    %930 = vmatprep.subr.mxu0 0.0
    %931 = vmatpush1.msra.mxu0 0.0
    %932 = vmatprep.subr.mxu0 0.0
    %933 = vmatpush1.msra.mxu0 0.0
    %934 = vmatprep.subr.mxu0 0.0
    %935 = vmatpush1.msra.mxu0 0.0
    %936 = vmatprep.subr.mxu0 0.0
    %937 = vmatpush1.msra.mxu0 0.0
    %938 = vmatprep.subr.mxu0 0.0
    %939 = vmatpush1.msra.mxu0 0.0
    %940 = vmatprep.subr.mxu0 0.0
    %941 = vmatpush1.msra.mxu0 0.0
    %942 = vmatprep.subr.mxu0 0.0
    %943 = vmatpush1.msra.mxu0 0.0
    %944 = vmatprep.subr.mxu0 0.0
    %945 = vmatpush1.msra.mxu0 0.0
    %946 = vmatprep.subr.mxu0 0.0
    %947 = vmatpush1.msra.mxu0 0.0
    %948 = vmatprep.subr.mxu0 0.0
    %949 = vmatpush1.msra.mxu0 0.0
    %950 = vmatprep.mubr.f32.mxu0 0.0
    %951 = vmatmul.mubr.f32.gmra.mrb[0].mxu0 %v884
    %v952 = vpop.f32.mrb[0].mxu0
    %v953 = vadd.f32 0.0, %v952
    %v954 = vpop.f32.mrb[0].mxu0
    %955 = vdwg.mxu0
    %v956 = vadd.f32 %v239, %v953
    %v957 = vxor.u32 %v956, 2147483648
    %v958 = vmul.f32 %v957, 1.442695
    %v959 = vpow.pop %v958
    %v960 = vadd.f32 %v959, 1.0
    %v961 = vrcp.pop %v960
    %v962 = vmul.f32 1.0, %v961
    %v963 = vtanh.pop %v956
    %v964 = vmul.f32 %v962, %v874
    %966 = vrot.lane.b32.xlu0 %v963, 64
    %v967 = vpop.permute.xlu0 %966
    %v969 = vmul.f32 %v962, %v967
    %971 = vrot.lane.b32.xlu0 %v969, 32
    %v972 = vpop.permute.xlu0 %971
    %v974 = vadd.f32 %v964, %v972
    %v975 = vtanh.pop %v974
    %977 = vrot.lane.b32.xlu0 %v975, 64
    %v978 = vpop.permute.xlu0 %977
    %v980 = vmul.f32 %v962, %v978
    %981 = vst [vmem:[#allocation14] sm:$0xff] 0.0
    %983 = vrot.lane.b32.xlu0 %v980, 32
    %v984 = vpop.permute.xlu0 %983
    %v985 = vsel %vm382, %v984, 0
    %987 = vmatprep.subr.mxu0 0.0
    %988 = vmatpush1.msra.mxu0 %v371
    %989 = vmatprep.subr.mxu0 0.0
    %990 = vmatpush1.msra.mxu0 %v372
    %991 = vmatprep.subr.mxu0 0.0
    %992 = vmatpush1.msra.mxu0 %v373
    %993 = vmatprep.subr.mxu0 0.0
    %994 = vmatpush1.msra.mxu0 %v374
    %995 = vmatprep.subr.mxu0 0.0
    %996 = vmatpush1.msra.mxu0 0.0
    %997 = vmatprep.subr.mxu0 0.0
    %998 = vmatpush1.msra.mxu0 0.0
    %999 = vmatprep.subr.mxu0 0.0
    %1000 = vmatpush1.msra.mxu0 0.0
    %1001 = vmatprep.subr.mxu0 0.0
    %1002 = vmatpush1.msra.mxu0 0.0
    %1003 = vmatprep.subr.mxu0 0.0
    %1004 = vmatpush1.msra.mxu0 0.0
    %1005 = vmatprep.subr.mxu0 0.0
    %1006 = vmatpush1.msra.mxu0 0.0
    %1007 = vmatprep.subr.mxu0 0.0
    %1008 = vmatpush1.msra.mxu0 0.0
    %1009 = vmatprep.subr.mxu0 0.0
    %1010 = vmatpush1.msra.mxu0 0.0
    %1011 = vmatprep.subr.mxu0 0.0
    %1012 = vmatpush1.msra.mxu0 0.0
    %1013 = vmatprep.subr.mxu0 0.0
    %1014 = vmatpush1.msra.mxu0 0.0
    %1015 = vmatprep.subr.mxu0 0.0
    %1016 = vmatpush1.msra.mxu0 0.0
    %1017 = vmatprep.subr.mxu0 0.0
    %1018 = vmatpush1.msra.mxu0 0.0
    %1019 = vmatprep.subr.mxu0 0.0
    %1020 = vmatpush1.msra.mxu0 0.0
    %1021 = vmatprep.subr.mxu0 0.0
    %1022 = vmatpush1.msra.mxu0 0.0
    %1023 = vmatprep.subr.mxu0 0.0
    %1024 = vmatpush1.msra.mxu0 0.0
    %1025 = vmatprep.subr.mxu0 0.0
    %1026 = vmatpush1.msra.mxu0 0.0
    %1027 = vmatprep.subr.mxu0 0.0
    %1028 = vmatpush1.msra.mxu0 0.0
    %1029 = vmatprep.subr.mxu0 0.0
    %1030 = vmatpush1.msra.mxu0 0.0
    %1031 = vmatprep.subr.mxu0 0.0
    %1032 = vmatpush1.msra.mxu0 0.0
    %1033 = vmatprep.subr.mxu0 0.0
    %1034 = vmatpush1.msra.mxu0 0.0
    %1035 = vmatprep.subr.mxu0 0.0
    %1036 = vmatpush1.msra.mxu0 0.0
    %1037 = vmatprep.subr.mxu0 0.0
    %1038 = vmatpush1.msra.mxu0 0.0
    %1039 = vmatprep.subr.mxu0 0.0
    %1040 = vmatpush1.msra.mxu0 0.0
    %1041 = vmatprep.subr.mxu0 0.0
    %1042 = vmatpush1.msra.mxu0 0.0
    %1043 = vmatprep.subr.mxu0 0.0
    %1044 = vmatpush1.msra.mxu0 0.0
    %1045 = vmatprep.subr.mxu0 0.0
    %1046 = vmatpush1.msra.mxu0 0.0
    %1047 = vmatprep.subr.mxu0 0.0
    %1048 = vmatpush1.msra.mxu0 0.0
    %1049 = vmatprep.subr.mxu0 0.0
    %1050 = vmatpush1.msra.mxu0 0.0
    %1051 = vmatprep.mubr.f32.mxu0 0.0
    %1052 = vmatmul.mubr.f32.gmra.mrb[0].mxu0 %v985
    %v1053 = vpop.f32.mrb[0].mxu0
    %v1054 = vadd.f32 0.0, %v1053
    %v1055 = vpop.f32.mrb[0].mxu0
    %1056 = vdwg.mxu0
    %v1057 = vadd.f32 %v333, %v1054
    %v1058 = vxor.u32 %v1057, 2147483648
    %v1059 = vmul.f32 %v1058, 1.442695
    %v1060 = vpow.pop %v1059
    %v1061 = vadd.f32 %v1060, 1.0
    %v1062 = vrcp.pop %v1061
    %v1063 = vmul.f32 1.0, %v1062
    %v1064 = vtanh.pop %v1057
    %v1065 = vmul.f32 %v1063, %v974
    %1067 = vrot.lane.b32.xlu0 %v1064, 64
    %v1068 = vpop.permute.xlu0 %1067
    %v1070 = vmul.f32 %v1063, %v1068
    %1072 = vrot.lane.b32.xlu0 %v1070, 32
    %v1073 = vpop.permute.xlu0 %1072
    %v1075 = vadd.f32 %v1065, %v1073
    %v1076 = vtanh.pop %v1075
    %1078 = vrot.lane.b32.xlu0 %v1076, 64
    %v1079 = vpop.permute.xlu0 %1078
    %v1081 = vmul.f32 %v1063, %v1079
    %1083 = vrot.lane.b32.xlu0 %v1081, 32
    %v1084 = vpop.permute.xlu0 %1083
    %v1085 = vsel %vm382, %v1084, 0
    %1087 = vmatprep.subr.mxu0 0.0
    %1088 = vmatpush1.msra.mxu0 %v375
    %1089 = vmatprep.subr.mxu0 0.0
    %1090 = vmatpush1.msra.mxu0 %v376
    %1091 = vmatprep.subr.mxu0 0.0
    %1092 = vmatpush1.msra.mxu0 %v377
    %1093 = vmatprep.subr.mxu0 0.0
    %1094 = vmatpush1.msra.mxu0 %v378
    %1095 = vmatprep.subr.mxu0 0.0
    %1096 = vmatpush1.msra.mxu0 0.0
    %1097 = vmatprep.subr.mxu0 0.0
    %1098 = vmatpush1.msra.mxu0 0.0
    %1099 = vmatprep.subr.mxu0 0.0
    %1100 = vmatpush1.msra.mxu0 0.0
    %1101 = vmatprep.subr.mxu0 0.0
    %1102 = vmatpush1.msra.mxu0 0.0
    %1103 = vmatprep.subr.mxu0 0.0
    %1104 = vmatpush1.msra.mxu0 0.0
    %1105 = vmatprep.subr.mxu0 0.0
    %1106 = vmatpush1.msra.mxu0 0.0
    %1107 = vmatprep.subr.mxu0 0.0
    %1108 = vmatpush1.msra.mxu0 0.0
    %1109 = vmatprep.subr.mxu0 0.0
    %1110 = vmatpush1.msra.mxu0 0.0
    %1111 = vmatprep.subr.mxu0 0.0
    %1112 = vmatpush1.msra.mxu0 0.0
    %1113 = vmatprep.subr.mxu0 0.0
    %1114 = vmatpush1.msra.mxu0 0.0
    %1115 = vmatprep.subr.mxu0 0.0
    %1116 = vmatpush1.msra.mxu0 0.0
    %1117 = vmatprep.subr.mxu0 0.0
    %1118 = vmatpush1.msra.mxu0 0.0
    %1119 = vmatprep.subr.mxu0 0.0
    %1120 = vmatpush1.msra.mxu0 0.0
    %1121 = vmatprep.subr.mxu0 0.0
    %1122 = vmatpush1.msra.mxu0 0.0
    %1123 = vmatprep.subr.mxu0 0.0
    %1124 = vmatpush1.msra.mxu0 0.0
    %1125 = vmatprep.subr.mxu0 0.0
    %1126 = vmatpush1.msra.mxu0 0.0
    %1127 = vmatprep.subr.mxu0 0.0
    %1128 = vmatpush1.msra.mxu0 0.0
    %1129 = vmatprep.subr.mxu0 0.0
    %1130 = vmatpush1.msra.mxu0 0.0
    %1131 = vmatprep.subr.mxu0 0.0
    %1132 = vmatpush1.msra.mxu0 0.0
    %1133 = vmatprep.subr.mxu0 0.0
    %1134 = vmatpush1.msra.mxu0 0.0
    %1135 = vmatprep.subr.mxu0 0.0
    %1136 = vmatpush1.msra.mxu0 0.0
    %1137 = vmatprep.subr.mxu0 0.0
    %1138 = vmatpush1.msra.mxu0 0.0
    %1139 = vmatprep.subr.mxu0 0.0
    %1140 = vmatpush1.msra.mxu0 0.0
    %1141 = vmatprep.subr.mxu0 0.0
    %1142 = vmatpush1.msra.mxu0 0.0
    %1143 = vmatprep.subr.mxu0 0.0
    %1144 = vmatpush1.msra.mxu0 0.0
    %1145 = vmatprep.subr.mxu0 0.0
    %1146 = vmatpush1.msra.mxu0 0.0
    %1147 = vmatprep.subr.mxu0 0.0
    %1148 = vmatpush1.msra.mxu0 0.0
    %1149 = vmatprep.subr.mxu0 0.0
    %1150 = vmatpush1.msra.mxu0 0.0
    %1151 = vmatprep.mubr.f32.mxu0 0.0
    %1152 = vmatmul.mubr.f32.gmra.mrb[0].mxu0 %v1085
    %v1153 = vpop.f32.mrb[0].mxu0
    %v1154 = vadd.f32 %v379, %v1153
    %v1155 = vpop.f32.mrb[0].mxu0
    %1156 = vdwg.mxu0
    %s1157 = scalar_lea.vmem [#allocation14], 8
    %1158 = vst [vmem:[%s1157] sm:$0xff] %v1154
    %1159 = vmax.xlane.f32.xlu0 %v1154
    %v1160 = vpop.xlane.xlu0 %1159
    %vm1161 = vcmp.eq.f32.partialorder %v1154, %v1160
    %v1162 = vsel %vm1161, %v381, 128
    %v1163 = vand.u32 %v1162, 65535
    %v1164 = vshra.s32 %v1162, 16
    %v1165 = vcvt.s32.f32 %v1163
    %v1166 = vcvt.s32.f32 %v1164
    %1167 = vmin.xlane.f32.xlu0 %v1166
    %v1168 = vpop.xlane.xlu0 %1167
    %vm1169 = vcmp.eq.f32.partialorder %v1166, %v1168
    %v1170 = vsel %vm1169, %v1165, inf
    %1171 = vmin.xlane.f32.xlu0 %v1170
    %v1172 = vpop.xlane.xlu0 %1171
    %v1173 = vcvt.f32.s32 %v1172
    %v1174 = vcvt.f32.s32 %v1168
    %v1175 = vshll.u32 %v1174, 16
    %v1176 = vadd.s32 %v1175, %v1173
    %vm1177 = vcmp.eq.s32.totalorder %v381, %v1176
    %v1178 = vsel %vm1177, 1, 0
    %v1179 = vcvt.s32.f32 %v1178
    %1180 = vmatprep.subr.mxu0 0.0
    %1181 = vmatpush1.msra.mxu0 %v371
    %1182 = vmatprep.subr.mxu0 0.0
    %1183 = vmatpush1.msra.mxu0 %v372
    %1184 = vmatprep.subr.mxu0 0.0
    %1185 = vmatpush1.msra.mxu0 %v373
    %1186 = vmatprep.subr.mxu0 0.0
    %1187 = vmatpush1.msra.mxu0 %v374
    %1188 = vmatprep.subr.mxu0 0.0
    %1189 = vmatpush1.msra.mxu0 0.0
    %1190 = vmatprep.subr.mxu0 0.0
    %1191 = vmatpush1.msra.mxu0 0.0
    %1192 = vmatprep.subr.mxu0 0.0
    %1193 = vmatpush1.msra.mxu0 0.0
    %1194 = vmatprep.subr.mxu0 0.0
    %1195 = vmatpush1.msra.mxu0 0.0
    %1196 = vmatprep.subr.mxu0 0.0
    %1197 = vmatpush1.msra.mxu0 0.0
    %1198 = vmatprep.subr.mxu0 0.0
    %1199 = vmatpush1.msra.mxu0 0.0
    %1200 = vmatprep.subr.mxu0 0.0
    %1201 = vmatpush1.msra.mxu0 0.0
    %1202 = vmatprep.subr.mxu0 0.0
    %1203 = vmatpush1.msra.mxu0 0.0
    %1204 = vmatprep.subr.mxu0 0.0
    %1205 = vmatpush1.msra.mxu0 0.0
    %1206 = vmatprep.subr.mxu0 0.0
    %1207 = vmatpush1.msra.mxu0 0.0
    %1208 = vmatprep.subr.mxu0 0.0
    %1209 = vmatpush1.msra.mxu0 0.0
    %1210 = vmatprep.subr.mxu0 0.0
    %1211 = vmatpush1.msra.mxu0 0.0
    %1212 = vmatprep.subr.mxu0 0.0
    %1213 = vmatpush1.msra.mxu0 0.0
    %1214 = vmatprep.subr.mxu0 0.0
    %1215 = vmatpush1.msra.mxu0 0.0
    %1216 = vmatprep.subr.mxu0 0.0
    %1217 = vmatpush1.msra.mxu0 0.0
    %1218 = vmatprep.subr.mxu0 0.0
    %1219 = vmatpush1.msra.mxu0 0.0
    %1220 = vmatprep.subr.mxu0 0.0
    %1221 = vmatpush1.msra.mxu0 0.0
    %1222 = vmatprep.subr.mxu0 0.0
    %1223 = vmatpush1.msra.mxu0 0.0
    %1224 = vmatprep.subr.mxu0 0.0
    %1225 = vmatpush1.msra.mxu0 0.0
    %1226 = vmatprep.subr.mxu0 0.0
    %1227 = vmatpush1.msra.mxu0 0.0
    %1228 = vmatprep.subr.mxu0 0.0
    %1229 = vmatpush1.msra.mxu0 0.0
    %1230 = vmatprep.subr.mxu0 0.0
    %1231 = vmatpush1.msra.mxu0 0.0
    %1232 = vmatprep.subr.mxu0 0.0
    %1233 = vmatpush1.msra.mxu0 0.0
    %1234 = vmatprep.subr.mxu0 0.0
    %1235 = vmatpush1.msra.mxu0 0.0
    %1236 = vmatprep.subr.mxu0 0.0
    %1237 = vmatpush1.msra.mxu0 0.0
    %1238 = vmatprep.subr.mxu0 0.0
    %1239 = vmatpush1.msra.mxu0 0.0
    %1240 = vmatprep.subr.mxu0 0.0
    %1241 = vmatpush1.msra.mxu0 0.0
    %1242 = vmatprep.subr.mxu0 0.0
    %1243 = vmatpush1.msra.mxu0 0.0
    %1244 = vmatprep.mubr.f32.mxu0 0.0
    %1245 = vmatmul.mubr.f32.gmra.mrb[0].mxu0 %v1085
    %v1246 = vpop.f32.mrb[0].mxu0
    %v1247 = vadd.f32 0.0, %v1246
    %v1248 = vpop.f32.mrb[0].mxu0
    %1249 = vdwg.mxu0
    %1250 = vmatprep.subr.mxu0 0.0
    %1251 = vmatpush1.msra.mxu0 %v250
    %1252 = vmatprep.subr.mxu0 0.0
    %1253 = vmatpush1.msra.mxu0 %v251
    %1254 = vmatprep.subr.mxu0 0.0
    %1255 = vmatpush1.msra.mxu0 %v252
    %1256 = vmatprep.subr.mxu0 0.0
    %1257 = vmatpush1.msra.mxu0 %v253
    %1258 = vmatprep.subr.mxu0 0.0
    %1259 = vmatpush1.msra.mxu0 %v254
    %1260 = vmatprep.subr.mxu0 0.0
    %1261 = vmatpush1.msra.mxu0 %v255
    %1262 = vmatprep.subr.mxu0 0.0
    %1263 = vmatpush1.msra.mxu0 %v256
    %1264 = vmatprep.subr.mxu0 0.0
    %1265 = vmatpush1.msra.mxu0 %v257
    %1266 = vmatprep.subr.mxu0 0.0
    %1267 = vmatpush1.msra.mxu0 %v258
    %1268 = vmatprep.subr.mxu0 0.0
    %1269 = vmatpush1.msra.mxu0 %v259
    %1270 = vmatprep.subr.mxu0 0.0
    %1271 = vmatpush1.msra.mxu0 %v260
    %1272 = vmatprep.subr.mxu0 0.0
    %1273 = vmatpush1.msra.mxu0 %v261
    %1274 = vmatprep.subr.mxu0 0.0
    %1275 = vmatpush1.msra.mxu0 %v262
    %1276 = vmatprep.subr.mxu0 0.0
    %1277 = vmatpush1.msra.mxu0 %v263
    %1278 = vmatprep.subr.mxu0 0.0
    %1279 = vmatpush1.msra.mxu0 %v264
    %1280 = vmatprep.subr.mxu0 0.0
    %1281 = vmatpush1.msra.mxu0 %v265
    %1282 = vmatprep.subr.mxu0 0.0
    %1283 = vmatpush1.msra.mxu0 0.0
    %1284 = vmatprep.subr.mxu0 0.0
    %1285 = vmatpush1.msra.mxu0 0.0
    %1286 = vmatprep.subr.mxu0 0.0
    %1287 = vmatpush1.msra.mxu0 0.0
    %1288 = vmatprep.subr.mxu0 0.0
    %1289 = vmatpush1.msra.mxu0 0.0
    %1290 = vmatprep.subr.mxu0 0.0
    %1291 = vmatpush1.msra.mxu0 0.0
    %1292 = vmatprep.subr.mxu0 0.0
    %1293 = vmatpush1.msra.mxu0 0.0
    %1294 = vmatprep.subr.mxu0 0.0
    %1295 = vmatpush1.msra.mxu0 0.0
    %1296 = vmatprep.subr.mxu0 0.0
    %1297 = vmatpush1.msra.mxu0 0.0
    %1298 = vmatprep.subr.mxu0 0.0
    %1299 = vmatpush1.msra.mxu0 0.0
    %1300 = vmatprep.subr.mxu0 0.0
    %1301 = vmatpush1.msra.mxu0 0.0
    %1302 = vmatprep.subr.mxu0 0.0
    %1303 = vmatpush1.msra.mxu0 0.0
    %1304 = vmatprep.subr.mxu0 0.0
    %1305 = vmatpush1.msra.mxu0 0.0
    %1306 = vmatprep.subr.mxu0 0.0
    %1307 = vmatpush1.msra.mxu0 0.0
    %1308 = vmatprep.subr.mxu0 0.0
    %1309 = vmatpush1.msra.mxu0 0.0
    %1310 = vmatprep.subr.mxu0 0.0
    %1311 = vmatpush1.msra.mxu0 0.0
    %1312 = vmatprep.subr.mxu0 0.0
    %1313 = vmatpush1.msra.mxu0 0.0
    %1314 = vmatprep.mubr.f32.mxu0 0.0
    %1315 = vmatmul.mubr.f32.gmra.mrb[0].mxu0 %v1179
    %v1316 = vpop.f32.mrb[0].mxu0
    %v1317 = vadd.f32 %v1247, %v1316
    %v1318 = vpop.f32.mrb[0].mxu0
    %1319 = vdwg.mxu0
    %v1320 = vxor.u32 %v1317, 2147483648
    %v1321 = vmul.f32 %v1320, 1.442695
    %v1322 = vpow.pop %v1321
    %v1323 = vadd.f32 %v1322, 1.0
    %v1324 = vrcp.pop %v1323
    %v1325 = vmul.f32 1.0, %v1324
    %v1326 = vtanh.pop %v1317
    %v1327 = vmul.f32 %v1325, %v1075
    %1329 = vrot.lane.b32.xlu0 %v1326, 64
    %v1330 = vpop.permute.xlu0 %1329
    %v1332 = vmul.f32 %v1325, %v1330
    %1334 = vrot.lane.b32.xlu0 %v1332, 32
    %v1335 = vpop.permute.xlu0 %1334
    %v1337 = vadd.f32 %v1327, %v1335
    %v1338 = vtanh.pop %v1337
    %1340 = vrot.lane.b32.xlu0 %v1338, 64
    %v1341 = vpop.permute.xlu0 %1340
    %v1343 = vmul.f32 %v1325, %v1341
    %1345 = vrot.lane.b32.xlu0 %v1343, 32
    %v1346 = vpop.permute.xlu0 %1345
    %v1347 = vsel %vm382, %v1346, 0
    %1349 = vmatprep.subr.mxu0 0.0
    %1350 = vmatpush1.msra.mxu0 %v375
    %1351 = vmatprep.subr.mxu0 0.0
    %1352 = vmatpush1.msra.mxu0 %v376
    %1353 = vmatprep.subr.mxu0 0.0
    %1354 = vmatpush1.msra.mxu0 %v377
    %1355 = vmatprep.subr.mxu0 0.0
    %1356 = vmatpush1.msra.mxu0 %v378
    %1357 = vmatprep.subr.mxu0 0.0
    %1358 = vmatpush1.msra.mxu0 0.0
    %1359 = vmatprep.subr.mxu0 0.0
    %1360 = vmatpush1.msra.mxu0 0.0
    %1361 = vmatprep.subr.mxu0 0.0
    %1362 = vmatpush1.msra.mxu0 0.0
    %1363 = vmatprep.subr.mxu0 0.0
    %1364 = vmatpush1.msra.mxu0 0.0
    %1365 = vmatprep.subr.mxu0 0.0
    %1366 = vmatpush1.msra.mxu0 0.0
    %1367 = vmatprep.subr.mxu0 0.0
    %1368 = vmatpush1.msra.mxu0 0.0
    %1369 = vmatprep.subr.mxu0 0.0
    %1370 = vmatpush1.msra.mxu0 0.0
    %1371 = vmatprep.subr.mxu0 0.0
    %1372 = vmatpush1.msra.mxu0 0.0
    %1373 = vmatprep.subr.mxu0 0.0
    %1374 = vmatpush1.msra.mxu0 0.0
    %1375 = vmatprep.subr.mxu0 0.0
    %1376 = vmatpush1.msra.mxu0 0.0
    %1377 = vmatprep.subr.mxu0 0.0
    %1378 = vmatpush1.msra.mxu0 0.0
    %1379 = vmatprep.subr.mxu0 0.0
    %1380 = vmatpush1.msra.mxu0 0.0
    %1381 = vmatprep.subr.mxu0 0.0
    %1382 = vmatpush1.msra.mxu0 0.0
    %1383 = vmatprep.subr.mxu0 0.0
    %1384 = vmatpush1.msra.mxu0 0.0
    %1385 = vmatprep.subr.mxu0 0.0
    %1386 = vmatpush1.msra.mxu0 0.0
    %1387 = vmatprep.subr.mxu0 0.0
    %1388 = vmatpush1.msra.mxu0 0.0
    %1389 = vmatprep.subr.mxu0 0.0
    %1390 = vmatpush1.msra.mxu0 0.0
    %1391 = vmatprep.subr.mxu0 0.0
    %1392 = vmatpush1.msra.mxu0 0.0
    %1393 = vmatprep.subr.mxu0 0.0
    %1394 = vmatpush1.msra.mxu0 0.0
    %1395 = vmatprep.subr.mxu0 0.0
    %1396 = vmatpush1.msra.mxu0 0.0
    %1397 = vmatprep.subr.mxu0 0.0
    %1398 = vmatpush1.msra.mxu0 0.0
    %1399 = vmatprep.subr.mxu0 0.0
    %1400 = vmatpush1.msra.mxu0 0.0
    %1401 = vmatprep.subr.mxu0 0.0
    %1402 = vmatpush1.msra.mxu0 0.0
    %1403 = vmatprep.subr.mxu0 0.0
    %1404 = vmatpush1.msra.mxu0 0.0
    %1405 = vmatprep.subr.mxu0 0.0
    %1406 = vmatpush1.msra.mxu0 0.0
    %1407 = vmatprep.subr.mxu0 0.0
    %1408 = vmatpush1.msra.mxu0 0.0
    %1409 = vmatprep.subr.mxu0 0.0
    %1410 = vmatpush1.msra.mxu0 0.0
    %1411 = vmatprep.subr.mxu0 0.0
    %1412 = vmatpush1.msra.mxu0 0.0
    %1413 = vmatprep.mubr.f32.mxu0 0.0
    %1414 = vmatmul.mubr.f32.gmra.mrb[0].mxu0 %v1347
    %v1415 = vpop.f32.mrb[0].mxu0
    %v1416 = vadd.f32 %v379, %v1415
    %v1417 = vpop.f32.mrb[0].mxu0
    %1418 = vdwg.mxu0
    %s1419 = scalar_lea.vmem [#allocation14], 16
    %1420 = vst [vmem:[%s1419] sm:$0xff] %v1416
    %1421 = vmax.xlane.f32.xlu0 %v1416
    %v1422 = vpop.xlane.xlu0 %1421
    %vm1423 = vcmp.eq.f32.partialorder %v1416, %v1422
    %v1424 = vsel %vm1423, %v381, 128
    %v1425 = vand.u32 %v1424, 65535
    %v1426 = vshra.s32 %v1424, 16
    %v1427 = vcvt.s32.f32 %v1425
    %v1428 = vcvt.s32.f32 %v1426
    %1429 = vmin.xlane.f32.xlu0 %v1428
    %v1430 = vpop.xlane.xlu0 %1429
    %vm1431 = vcmp.eq.f32.partialorder %v1428, %v1430
    %v1432 = vsel %vm1431, %v1427, inf
    %1433 = vmin.xlane.f32.xlu0 %v1432
    %v1434 = vpop.xlane.xlu0 %1433
    %v1435 = vcvt.f32.s32 %v1434
    %v1436 = vcvt.f32.s32 %v1430
    %v1437 = vshll.u32 %v1436, 16
    %v1438 = vadd.s32 %v1437, %v1435
    %vm1439 = vcmp.eq.s32.totalorder %v381, %v1438
    %v1440 = vsel %vm1439, 1, 0
    %v1441 = vcvt.s32.f32 %v1440
    %1442 = vmatprep.subr.mxu0 0.0
    %1443 = vmatpush1.msra.mxu0 %v371
    %1444 = vmatprep.subr.mxu0 0.0
    %1445 = vmatpush1.msra.mxu0 %v372
    %1446 = vmatprep.subr.mxu0 0.0
    %1447 = vmatpush1.msra.mxu0 %v373
    %1448 = vmatprep.subr.mxu0 0.0
    %1449 = vmatpush1.msra.mxu0 %v374
    %1450 = vmatprep.subr.mxu0 0.0
    %1451 = vmatpush1.msra.mxu0 0.0
    %1452 = vmatprep.subr.mxu0 0.0
    %1453 = vmatpush1.msra.mxu0 0.0
    %1454 = vmatprep.subr.mxu0 0.0
    %1455 = vmatpush1.msra.mxu0 0.0
    %1456 = vmatprep.subr.mxu0 0.0
    %1457 = vmatpush1.msra.mxu0 0.0
    %1458 = vmatprep.subr.mxu0 0.0
    %1459 = vmatpush1.msra.mxu0 0.0
    %1460 = vmatprep.subr.mxu0 0.0
    %1461 = vmatpush1.msra.mxu0 0.0
    %1462 = vmatprep.subr.mxu0 0.0
    %1463 = vmatpush1.msra.mxu0 0.0
    %1464 = vmatprep.subr.mxu0 0.0
    %1465 = vmatpush1.msra.mxu0 0.0
    %1466 = vmatprep.subr.mxu0 0.0
    %1467 = vmatpush1.msra.mxu0 0.0
    %1468 = vmatprep.subr.mxu0 0.0
    %1469 = vmatpush1.msra.mxu0 0.0
    %1470 = vmatprep.subr.mxu0 0.0
    %1471 = vmatpush1.msra.mxu0 0.0
    %1472 = vmatprep.subr.mxu0 0.0
    %1473 = vmatpush1.msra.mxu0 0.0
    %1474 = vmatprep.subr.mxu0 0.0
    %1475 = vmatpush1.msra.mxu0 0.0
    %1476 = vmatprep.subr.mxu0 0.0
    %1477 = vmatpush1.msra.mxu0 0.0
    %1478 = vmatprep.subr.mxu0 0.0
    %1479 = vmatpush1.msra.mxu0 0.0
    %1480 = vmatprep.subr.mxu0 0.0
    %1481 = vmatpush1.msra.mxu0 0.0
    %1482 = vmatprep.subr.mxu0 0.0
    %1483 = vmatpush1.msra.mxu0 0.0
    %1484 = vmatprep.subr.mxu0 0.0
    %1485 = vmatpush1.msra.mxu0 0.0
    %1486 = vmatprep.subr.mxu0 0.0
    %1487 = vmatpush1.msra.mxu0 0.0
    %1488 = vmatprep.subr.mxu0 0.0
    %1489 = vmatpush1.msra.mxu0 0.0
    %1490 = vmatprep.subr.mxu0 0.0
    %1491 = vmatpush1.msra.mxu0 0.0
    %1492 = vmatprep.subr.mxu0 0.0
    %1493 = vmatpush1.msra.mxu0 0.0
    %1494 = vmatprep.subr.mxu0 0.0
    %1495 = vmatpush1.msra.mxu0 0.0
    %1496 = vmatprep.subr.mxu0 0.0
    %1497 = vmatpush1.msra.mxu0 0.0
    %1498 = vmatprep.subr.mxu0 0.0
    %1499 = vmatpush1.msra.mxu0 0.0
    %1500 = vmatprep.subr.mxu0 0.0
    %1501 = vmatpush1.msra.mxu0 0.0
    %1502 = vmatprep.subr.mxu0 0.0
    %1503 = vmatpush1.msra.mxu0 0.0
    %1504 = vmatprep.subr.mxu0 0.0
    %1505 = vmatpush1.msra.mxu0 0.0
    %1506 = vmatprep.mubr.f32.mxu0 0.0
    %1507 = vmatmul.mubr.f32.gmra.mrb[0].mxu0 %v1347
    %v1508 = vpop.f32.mrb[0].mxu0
    %v1509 = vadd.f32 0.0, %v1508
    %v1510 = vpop.f32.mrb[0].mxu0
    %1511 = vdwg.mxu0
    %1512 = vmatprep.subr.mxu0 0.0
    %1513 = vmatpush1.msra.mxu0 %v250
    %1514 = vmatprep.subr.mxu0 0.0
    %1515 = vmatpush1.msra.mxu0 %v251
    %1516 = vmatprep.subr.mxu0 0.0
    %1517 = vmatpush1.msra.mxu0 %v252
    %1518 = vmatprep.subr.mxu0 0.0
    %1519 = vmatpush1.msra.mxu0 %v253
    %1520 = vmatprep.subr.mxu0 0.0
    %1521 = vmatpush1.msra.mxu0 %v254
    %1522 = vmatprep.subr.mxu0 0.0
    %1523 = vmatpush1.msra.mxu0 %v255
    %1524 = vmatprep.subr.mxu0 0.0
    %1525 = vmatpush1.msra.mxu0 %v256
    %1526 = vmatprep.subr.mxu0 0.0
    %1527 = vmatpush1.msra.mxu0 %v257
    %1528 = vmatprep.subr.mxu0 0.0
    %1529 = vmatpush1.msra.mxu0 %v258
    %1530 = vmatprep.subr.mxu0 0.0
    %1531 = vmatpush1.msra.mxu0 %v259
    %1532 = vmatprep.subr.mxu0 0.0
    %1533 = vmatpush1.msra.mxu0 %v260
    %1534 = vmatprep.subr.mxu0 0.0
    %1535 = vmatpush1.msra.mxu0 %v261
    %1536 = vmatprep.subr.mxu0 0.0
    %1537 = vmatpush1.msra.mxu0 %v262
    %1538 = vmatprep.subr.mxu0 0.0
    %1539 = vmatpush1.msra.mxu0 %v263
    %1540 = vmatprep.subr.mxu0 0.0
    %1541 = vmatpush1.msra.mxu0 %v264
    %1542 = vmatprep.subr.mxu0 0.0
    %1543 = vmatpush1.msra.mxu0 %v265
    %1544 = vmatprep.subr.mxu0 0.0
    %1545 = vmatpush1.msra.mxu0 0.0
    %1546 = vmatprep.subr.mxu0 0.0
    %1547 = vmatpush1.msra.mxu0 0.0
    %1548 = vmatprep.subr.mxu0 0.0
    %1549 = vmatpush1.msra.mxu0 0.0
    %1550 = vmatprep.subr.mxu0 0.0
    %1551 = vmatpush1.msra.mxu0 0.0
    %1552 = vmatprep.subr.mxu0 0.0
    %1553 = vmatpush1.msra.mxu0 0.0
    %1554 = vmatprep.subr.mxu0 0.0
    %1555 = vmatpush1.msra.mxu0 0.0
    %1556 = vmatprep.subr.mxu0 0.0
    %1557 = vmatpush1.msra.mxu0 0.0
    %1558 = vmatprep.subr.mxu0 0.0
    %1559 = vmatpush1.msra.mxu0 0.0
    %1560 = vmatprep.subr.mxu0 0.0
    %1561 = vmatpush1.msra.mxu0 0.0
    %1562 = vmatprep.subr.mxu0 0.0
    %1563 = vmatpush1.msra.mxu0 0.0
    %1564 = vmatprep.subr.mxu0 0.0
    %1565 = vmatpush1.msra.mxu0 0.0
    %1566 = vmatprep.subr.mxu0 0.0
    %1567 = vmatpush1.msra.mxu0 0.0
    %1568 = vmatprep.subr.mxu0 0.0
    %1569 = vmatpush1.msra.mxu0 0.0
    %1570 = vmatprep.subr.mxu0 0.0
    %1571 = vmatpush1.msra.mxu0 0.0
    %1572 = vmatprep.subr.mxu0 0.0
    %1573 = vmatpush1.msra.mxu0 0.0
    %1574 = vmatprep.subr.mxu0 0.0
    %1575 = vmatpush1.msra.mxu0 0.0
    %1576 = vmatprep.mubr.f32.mxu0 0.0
    %1577 = vmatmul.mubr.f32.gmra.mrb[0].mxu0 %v1441
    %v1578 = vpop.f32.mrb[0].mxu0
    %v1579 = vadd.f32 %v1509, %v1578
    %v1580 = vpop.f32.mrb[0].mxu0
    %1581 = vdwg.mxu0
    %v1582 = vxor.u32 %v1579, 2147483648
    %v1583 = vmul.f32 %v1582, 1.442695
    %v1584 = vpow.pop %v1583
    %v1585 = vadd.f32 %v1584, 1.0
    %v1586 = vrcp.pop %v1585
    %v1587 = vmul.f32 1.0, %v1586
    %v1588 = vtanh.pop %v1579
    %v1589 = vmul.f32 %v1587, %v1337
    %1591 = vrot.lane.b32.xlu0 %v1588, 64
    %v1592 = vpop.permute.xlu0 %1591
    %v1594 = vmul.f32 %v1587, %v1592
    %1596 = vrot.lane.b32.xlu0 %v1594, 32
    %v1597 = vpop.permute.xlu0 %1596
    %v1599 = vadd.f32 %v1589, %v1597
    %v1600 = vtanh.pop %v1599
    %1602 = vrot.lane.b32.xlu0 %v1600, 64
    %v1603 = vpop.permute.xlu0 %1602
    %v1605 = vmul.f32 %v1587, %v1603
    %1607 = vrot.lane.b32.xlu0 %v1605, 32
    %v1608 = vpop.permute.xlu0 %1607
    %v1609 = vsel %vm382, %v1608, 0
    %1611 = vmatprep.subr.mxu0 0.0
    %1612 = vmatpush1.msra.mxu0 %v375
    %1613 = vmatprep.subr.mxu0 0.0
    %1614 = vmatpush1.msra.mxu0 %v376
    %1615 = vmatprep.subr.mxu0 0.0
    %1616 = vmatpush1.msra.mxu0 %v377
    %1617 = vmatprep.subr.mxu0 0.0
    %1618 = vmatpush1.msra.mxu0 %v378
    %1619 = vmatprep.subr.mxu0 0.0
    %1620 = vmatpush1.msra.mxu0 0.0
    %1621 = vmatprep.subr.mxu0 0.0
    %1622 = vmatpush1.msra.mxu0 0.0
    %1623 = vmatprep.subr.mxu0 0.0
    %1624 = vmatpush1.msra.mxu0 0.0
    %1625 = vmatprep.subr.mxu0 0.0
    %1626 = vmatpush1.msra.mxu0 0.0
    %1627 = vmatprep.subr.mxu0 0.0
    %1628 = vmatpush1.msra.mxu0 0.0
    %1629 = vmatprep.subr.mxu0 0.0
    %1630 = vmatpush1.msra.mxu0 0.0
    %1631 = vmatprep.subr.mxu0 0.0
    %1632 = vmatpush1.msra.mxu0 0.0
    %1633 = vmatprep.subr.mxu0 0.0
    %1634 = vmatpush1.msra.mxu0 0.0
    %1635 = vmatprep.subr.mxu0 0.0
    %1636 = vmatpush1.msra.mxu0 0.0
    %1637 = vmatprep.subr.mxu0 0.0
    %1638 = vmatpush1.msra.mxu0 0.0
    %1639 = vmatprep.subr.mxu0 0.0
    %1640 = vmatpush1.msra.mxu0 0.0
    %1641 = vmatprep.subr.mxu0 0.0
    %1642 = vmatpush1.msra.mxu0 0.0
    %1643 = vmatprep.subr.mxu0 0.0
    %1644 = vmatpush1.msra.mxu0 0.0
    %1645 = vmatprep.subr.mxu0 0.0
    %1646 = vmatpush1.msra.mxu0 0.0
    %1647 = vmatprep.subr.mxu0 0.0
    %1648 = vmatpush1.msra.mxu0 0.0
    %1649 = vmatprep.subr.mxu0 0.0
    %1650 = vmatpush1.msra.mxu0 0.0
    %1651 = vmatprep.subr.mxu0 0.0
    %1652 = vmatpush1.msra.mxu0 0.0
    %1653 = vmatprep.subr.mxu0 0.0
    %1654 = vmatpush1.msra.mxu0 0.0
    %1655 = vmatprep.subr.mxu0 0.0
    %1656 = vmatpush1.msra.mxu0 0.0
    %1657 = vmatprep.subr.mxu0 0.0
    %1658 = vmatpush1.msra.mxu0 0.0
    %1659 = vmatprep.subr.mxu0 0.0
    %1660 = vmatpush1.msra.mxu0 0.0
    %1661 = vmatprep.subr.mxu0 0.0
    %1662 = vmatpush1.msra.mxu0 0.0
    %1663 = vmatprep.subr.mxu0 0.0
    %1664 = vmatpush1.msra.mxu0 0.0
    %1665 = vmatprep.subr.mxu0 0.0
    %1666 = vmatpush1.msra.mxu0 0.0
    %1667 = vmatprep.subr.mxu0 0.0
    %1668 = vmatpush1.msra.mxu0 0.0
    %1669 = vmatprep.subr.mxu0 0.0
    %1670 = vmatpush1.msra.mxu0 0.0
    %1671 = vmatprep.subr.mxu0 0.0
    %1672 = vmatpush1.msra.mxu0 0.0
    %1673 = vmatprep.subr.mxu0 0.0
    %1674 = vmatpush1.msra.mxu0 0.0
    %1675 = vmatprep.mubr.f32.mxu0 0.0
    %1676 = vmatmul.mubr.f32.gmra.mrb[0].mxu0 %v1609
    %v1677 = vpop.f32.mrb[0].mxu0
    %v1678 = vadd.f32 %v379, %v1677
    %v1679 = vpop.f32.mrb[0].mxu0
    %1680 = vdwg.mxu0
    %s1681 = scalar_lea.vmem [#allocation14], 24
    %1682 = vst [vmem:[%s1681] sm:$0xff] %v1678
    %1683 = vmatprep.subr.mxu0 0.0
    %1684 = vmatpush1.msra.mxu0 %v371
    %1685 = vmatprep.subr.mxu0 0.0
    %1686 = vmatpush1.msra.mxu0 %v372
    %1687 = vmatprep.subr.mxu0 0.0
    %1688 = vmatpush1.msra.mxu0 %v373
    %1689 = vmatprep.subr.mxu0 0.0
    %1690 = vmatpush1.msra.mxu0 %v374
    %1691 = vmatprep.subr.mxu0 0.0
    %1692 = vmatpush1.msra.mxu0 0.0
    %1693 = vmatprep.subr.mxu0 0.0
    %1694 = vmatpush1.msra.mxu0 0.0
    %1695 = vmatprep.subr.mxu0 0.0
    %1696 = vmatpush1.msra.mxu0 0.0
    %1697 = vmatprep.subr.mxu0 0.0
    %1698 = vmatpush1.msra.mxu0 0.0
    %1699 = vmatprep.subr.mxu0 0.0
    %1700 = vmatpush1.msra.mxu0 0.0
    %1701 = vmatprep.subr.mxu0 0.0
    %1702 = vmatpush1.msra.mxu0 0.0
    %1703 = vmatprep.subr.mxu0 0.0
    %1704 = vmatpush1.msra.mxu0 0.0
    %1705 = vmatprep.subr.mxu0 0.0
    %1706 = vmatpush1.msra.mxu0 0.0
    %1707 = vmatprep.subr.mxu0 0.0
    %1708 = vmatpush1.msra.mxu0 0.0
    %1709 = vmatprep.subr.mxu0 0.0
    %1710 = vmatpush1.msra.mxu0 0.0
    %1711 = vmatprep.subr.mxu0 0.0
    %1712 = vmatpush1.msra.mxu0 0.0
    %1713 = vmatprep.subr.mxu0 0.0
    %1714 = vmatpush1.msra.mxu0 0.0
    %1715 = vmatprep.subr.mxu0 0.0
    %1716 = vmatpush1.msra.mxu0 0.0
    %1717 = vmatprep.subr.mxu0 0.0
    %1718 = vmatpush1.msra.mxu0 0.0
    %1719 = vmatprep.subr.mxu0 0.0
    %1720 = vmatpush1.msra.mxu0 0.0
    %1721 = vmatprep.subr.mxu0 0.0
    %1722 = vmatpush1.msra.mxu0 0.0
    %1723 = vmatprep.subr.mxu0 0.0
    %1724 = vmatpush1.msra.mxu0 0.0
    %1725 = vmatprep.subr.mxu0 0.0
    %1726 = vmatpush1.msra.mxu0 0.0
    %1727 = vmatprep.subr.mxu0 0.0
    %1728 = vmatpush1.msra.mxu0 0.0
    %1729 = vmatprep.subr.mxu0 0.0
    %1730 = vmatpush1.msra.mxu0 0.0
    %1731 = vmatprep.subr.mxu0 0.0
    %1732 = vmatpush1.msra.mxu0 0.0
    %1733 = vmatprep.subr.mxu0 0.0
    %1734 = vmatpush1.msra.mxu0 0.0
    %1735 = vmatprep.subr.mxu0 0.0
    %1736 = vmatpush1.msra.mxu0 0.0
    %1737 = vmatprep.subr.mxu0 0.0
    %1738 = vmatpush1.msra.mxu0 0.0
    %1739 = vmatprep.subr.mxu0 0.0
    %1740 = vmatpush1.msra.mxu0 0.0
    %1741 = vmatprep.subr.mxu0 0.0
    %1742 = vmatpush1.msra.mxu0 0.0
    %1743 = vmatprep.subr.mxu0 0.0
    %1744 = vmatpush1.msra.mxu0 0.0
    %1745 = vmatprep.subr.mxu0 0.0
    %1746 = vmatpush1.msra.mxu0 0.0
    %1747 = vmatprep.mubr.f32.mxu0 0.0
    %1748 = vmatmul.mubr.f32.gmra.mrb[0].mxu0 %v1609
    %v1749 = vpop.f32.mrb[0].mxu0
    %v1750 = vadd.f32 0.0, %v1749
    %v1751 = vpop.f32.mrb[0].mxu0
    %1752 = vdwg.mxu0
    %v1753 = vadd.f32 %v346, %v1750
    %v1754 = vxor.u32 %v1753, 2147483648
    %v1755 = vmul.f32 %v1754, 1.442695
    %v1756 = vpow.pop %v1755
    %v1757 = vadd.f32 %v1756, 1.0
    %v1758 = vrcp.pop %v1757
    %v1759 = vmul.f32 1.0, %v1758
    %v1760 = vtanh.pop %v1753
    %v1761 = vmul.f32 %v1759, %v1599
    %1763 = vrot.lane.b32.xlu0 %v1760, 64
    %v1764 = vpop.permute.xlu0 %1763
    %v1766 = vmul.f32 %v1759, %v1764
    %1768 = vrot.lane.b32.xlu0 %v1766, 32
    %v1769 = vpop.permute.xlu0 %1768
    %v1771 = vadd.f32 %v1761, %v1769
    %v1772 = vtanh.pop %v1771
    %1774 = vrot.lane.b32.xlu0 %v1772, 64
    %v1775 = vpop.permute.xlu0 %1774
    %v1777 = vmul.f32 %v1759, %v1775
    %1779 = vrot.lane.b32.xlu0 %v1777, 32
    %v1780 = vpop.permute.xlu0 %1779
    %v1781 = vsel %vm382, %v1780, 0
    %1783 = vmatprep.subr.mxu0 0.0
    %1784 = vmatpush1.msra.mxu0 %v375
    %1785 = vmatprep.subr.mxu0 0.0
    %1786 = vmatpush1.msra.mxu0 %v376
    %1787 = vmatprep.subr.mxu0 0.0
    %1788 = vmatpush1.msra.mxu0 %v377
    %1789 = vmatprep.subr.mxu0 0.0
    %1790 = vmatpush1.msra.mxu0 %v378
    %1791 = vmatprep.subr.mxu0 0.0
    %1792 = vmatpush1.msra.mxu0 0.0
    %1793 = vmatprep.subr.mxu0 0.0
    %1794 = vmatpush1.msra.mxu0 0.0
    %1795 = vmatprep.subr.mxu0 0.0
    %1796 = vmatpush1.msra.mxu0 0.0
    %1797 = vmatprep.subr.mxu0 0.0
    %1798 = vmatpush1.msra.mxu0 0.0
    %1799 = vmatprep.subr.mxu0 0.0
    %1800 = vmatpush1.msra.mxu0 0.0
    %1801 = vmatprep.subr.mxu0 0.0
    %1802 = vmatpush1.msra.mxu0 0.0
    %1803 = vmatprep.subr.mxu0 0.0
    %1804 = vmatpush1.msra.mxu0 0.0
    %1805 = vmatprep.subr.mxu0 0.0
    %1806 = vmatpush1.msra.mxu0 0.0
    %1807 = vmatprep.subr.mxu0 0.0
    %1808 = vmatpush1.msra.mxu0 0.0
    %1809 = vmatprep.subr.mxu0 0.0
    %1810 = vmatpush1.msra.mxu0 0.0
    %1811 = vmatprep.subr.mxu0 0.0
    %1812 = vmatpush1.msra.mxu0 0.0
    %1813 = vmatprep.subr.mxu0 0.0
    %1814 = vmatpush1.msra.mxu0 0.0
    %1815 = vmatprep.subr.mxu0 0.0
    %1816 = vmatpush1.msra.mxu0 0.0
    %1817 = vmatprep.subr.mxu0 0.0
    %1818 = vmatpush1.msra.mxu0 0.0
    %1819 = vmatprep.subr.mxu0 0.0
    %1820 = vmatpush1.msra.mxu0 0.0
    %1821 = vmatprep.subr.mxu0 0.0
    %1822 = vmatpush1.msra.mxu0 0.0
    %1823 = vmatprep.subr.mxu0 0.0
    %1824 = vmatpush1.msra.mxu0 0.0
    %1825 = vmatprep.subr.mxu0 0.0
    %1826 = vmatpush1.msra.mxu0 0.0
    %1827 = vmatprep.subr.mxu0 0.0
    %1828 = vmatpush1.msra.mxu0 0.0
    %1829 = vmatprep.subr.mxu0 0.0
    %1830 = vmatpush1.msra.mxu0 0.0
    %1831 = vmatprep.subr.mxu0 0.0
    %1832 = vmatpush1.msra.mxu0 0.0
    %1833 = vmatprep.subr.mxu0 0.0
    %1834 = vmatpush1.msra.mxu0 0.0
    %1835 = vmatprep.subr.mxu0 0.0
    %1836 = vmatpush1.msra.mxu0 0.0
    %1837 = vmatprep.subr.mxu0 0.0
    %1838 = vmatpush1.msra.mxu0 0.0
    %1839 = vmatprep.subr.mxu0 0.0
    %1840 = vmatpush1.msra.mxu0 0.0
    %1841 = vmatprep.subr.mxu0 0.0
    %1842 = vmatpush1.msra.mxu0 0.0
    %1843 = vmatprep.subr.mxu0 0.0
    %1844 = vmatpush1.msra.mxu0 0.0
    %1845 = vmatprep.subr.mxu0 0.0
    %1846 = vmatpush1.msra.mxu0 0.0
    %1847 = vmatprep.mubr.f32.mxu0 0.0
    %1848 = vmatmul.mubr.f32.gmra.mrb[0].mxu0 %v1781
    %v1849 = vpop.f32.mrb[0].mxu0
    %v1850 = vadd.f32 %v379, %v1849
    %v1851 = vpop.f32.mrb[0].mxu0
    %1852 = vdwg.mxu0
    %s1853 = scalar_lea.vmem [#allocation14], 32
    %1854 = vst [vmem:[%s1853] sm:$0xff] %v1850
    %1855 = vmatprep.subr.mxu0 0.0
    %1856 = vmatpush1.msra.mxu0 %v371
    %1857 = vmatprep.subr.mxu0 0.0
    %1858 = vmatpush1.msra.mxu0 %v372
    %1859 = vmatprep.subr.mxu0 0.0
    %1860 = vmatpush1.msra.mxu0 %v373
    %1861 = vmatprep.subr.mxu0 0.0
    %1862 = vmatpush1.msra.mxu0 %v374
    %1863 = vmatprep.subr.mxu0 0.0
    %1864 = vmatpush1.msra.mxu0 0.0
    %1865 = vmatprep.subr.mxu0 0.0
    %1866 = vmatpush1.msra.mxu0 0.0
    %1867 = vmatprep.subr.mxu0 0.0
    %1868 = vmatpush1.msra.mxu0 0.0
    %1869 = vmatprep.subr.mxu0 0.0
    %1870 = vmatpush1.msra.mxu0 0.0
    %1871 = vmatprep.subr.mxu0 0.0
    %1872 = vmatpush1.msra.mxu0 0.0
    %1873 = vmatprep.subr.mxu0 0.0
    %1874 = vmatpush1.msra.mxu0 0.0
    %1875 = vmatprep.subr.mxu0 0.0
    %1876 = vmatpush1.msra.mxu0 0.0
    %1877 = vmatprep.subr.mxu0 0.0
    %1878 = vmatpush1.msra.mxu0 0.0
    %1879 = vmatprep.subr.mxu0 0.0
    %1880 = vmatpush1.msra.mxu0 0.0
    %1881 = vmatprep.subr.mxu0 0.0
    %1882 = vmatpush1.msra.mxu0 0.0
    %1883 = vmatprep.subr.mxu0 0.0
    %1884 = vmatpush1.msra.mxu0 0.0
    %1885 = vmatprep.subr.mxu0 0.0
    %1886 = vmatpush1.msra.mxu0 0.0
    %1887 = vmatprep.subr.mxu0 0.0
    %1888 = vmatpush1.msra.mxu0 0.0
    %1889 = vmatprep.subr.mxu0 0.0
    %1890 = vmatpush1.msra.mxu0 0.0
    %1891 = vmatprep.subr.mxu0 0.0
    %1892 = vmatpush1.msra.mxu0 0.0
    %1893 = vmatprep.subr.mxu0 0.0
    %1894 = vmatpush1.msra.mxu0 0.0
    %1895 = vmatprep.subr.mxu0 0.0
    %1896 = vmatpush1.msra.mxu0 0.0
    %1897 = vmatprep.subr.mxu0 0.0
    %1898 = vmatpush1.msra.mxu0 0.0
    %1899 = vmatprep.subr.mxu0 0.0
    %1900 = vmatpush1.msra.mxu0 0.0
    %1901 = vmatprep.subr.mxu0 0.0
    %1902 = vmatpush1.msra.mxu0 0.0
    %1903 = vmatprep.subr.mxu0 0.0
    %1904 = vmatpush1.msra.mxu0 0.0
    %1905 = vmatprep.subr.mxu0 0.0
    %1906 = vmatpush1.msra.mxu0 0.0
    %1907 = vmatprep.subr.mxu0 0.0
    %1908 = vmatpush1.msra.mxu0 0.0
    %1909 = vmatprep.subr.mxu0 0.0
    %1910 = vmatpush1.msra.mxu0 0.0
    %1911 = vmatprep.subr.mxu0 0.0
    %1912 = vmatpush1.msra.mxu0 0.0
    %1913 = vmatprep.subr.mxu0 0.0
    %1914 = vmatpush1.msra.mxu0 0.0
    %1915 = vmatprep.subr.mxu0 0.0
    %1916 = vmatpush1.msra.mxu0 0.0
    %1917 = vmatprep.subr.mxu0 0.0
    %1918 = vmatpush1.msra.mxu0 0.0
    %1919 = vmatprep.mubr.f32.mxu0 0.0
    %1920 = vmatmul.mubr.f32.gmra.mrb[0].mxu0 %v1781
    %v1921 = vpop.f32.mrb[0].mxu0
    %v1922 = vadd.f32 0.0, %v1921
    %v1923 = vpop.f32.mrb[0].mxu0
    %1924 = vdwg.mxu0
    %v1925 = vadd.f32 %v351, %v1922
    %v1926 = vxor.u32 %v1925, 2147483648
    %v1927 = vmul.f32 %v1926, 1.442695
    %v1928 = vpow.pop %v1927
    %v1929 = vadd.f32 %v1928, 1.0
    %v1930 = vrcp.pop %v1929
    %v1931 = vmul.f32 1.0, %v1930
    %v1932 = vtanh.pop %v1925
    %v1933 = vmul.f32 %v1931, %v1771
    %1935 = vrot.lane.b32.xlu0 %v1932, 64
    %v1936 = vpop.permute.xlu0 %1935
    %v1938 = vmul.f32 %v1931, %v1936
    %1940 = vrot.lane.b32.xlu0 %v1938, 32
    %v1941 = vpop.permute.xlu0 %1940
    %v1943 = vadd.f32 %v1933, %v1941
    %v1944 = vtanh.pop %v1943
    %1946 = vrot.lane.b32.xlu0 %v1944, 64
    %v1947 = vpop.permute.xlu0 %1946
    %v1949 = vmul.f32 %v1931, %v1947
    %1951 = vrot.lane.b32.xlu0 %v1949, 32
    %v1952 = vpop.permute.xlu0 %1951
    %v1953 = vsel %vm382, %v1952, 0
    %1955 = vmatprep.subr.mxu0 0.0
    %1956 = vmatpush1.msra.mxu0 %v375
    %1957 = vmatprep.subr.mxu0 0.0
    %1958 = vmatpush1.msra.mxu0 %v376
    %1959 = vmatprep.subr.mxu0 0.0
    %1960 = vmatpush1.msra.mxu0 %v377
    %1961 = vmatprep.subr.mxu0 0.0
    %1962 = vmatpush1.msra.mxu0 %v378
    %1963 = vmatprep.subr.mxu0 0.0
    %1964 = vmatpush1.msra.mxu0 0.0
    %1965 = vmatprep.subr.mxu0 0.0
    %1966 = vmatpush1.msra.mxu0 0.0
    %1967 = vmatprep.subr.mxu0 0.0
    %1968 = vmatpush1.msra.mxu0 0.0
    %1969 = vmatprep.subr.mxu0 0.0
    %1970 = vmatpush1.msra.mxu0 0.0
    %1971 = vmatprep.subr.mxu0 0.0
    %1972 = vmatpush1.msra.mxu0 0.0
    %1973 = vmatprep.subr.mxu0 0.0
    %1974 = vmatpush1.msra.mxu0 0.0
    %1975 = vmatprep.subr.mxu0 0.0
    %1976 = vmatpush1.msra.mxu0 0.0
    %1977 = vmatprep.subr.mxu0 0.0
    %1978 = vmatpush1.msra.mxu0 0.0
    %1979 = vmatprep.subr.mxu0 0.0
    %1980 = vmatpush1.msra.mxu0 0.0
    %1981 = vmatprep.subr.mxu0 0.0
    %1982 = vmatpush1.msra.mxu0 0.0
    %1983 = vmatprep.subr.mxu0 0.0
    %1984 = vmatpush1.msra.mxu0 0.0
    %1985 = vmatprep.subr.mxu0 0.0
    %1986 = vmatpush1.msra.mxu0 0.0
    %1987 = vmatprep.subr.mxu0 0.0
    %1988 = vmatpush1.msra.mxu0 0.0
    %1989 = vmatprep.subr.mxu0 0.0
    %1990 = vmatpush1.msra.mxu0 0.0
    %1991 = vmatprep.subr.mxu0 0.0
    %1992 = vmatpush1.msra.mxu0 0.0
    %1993 = vmatprep.subr.mxu0 0.0
    %1994 = vmatpush1.msra.mxu0 0.0
    %1995 = vmatprep.subr.mxu0 0.0
    %1996 = vmatpush1.msra.mxu0 0.0
    %1997 = vmatprep.subr.mxu0 0.0
    %1998 = vmatpush1.msra.mxu0 0.0
    %1999 = vmatprep.subr.mxu0 0.0
    %2000 = vmatpush1.msra.mxu0 0.0
    %2001 = vmatprep.subr.mxu0 0.0
    %2002 = vmatpush1.msra.mxu0 0.0
    %2003 = vmatprep.subr.mxu0 0.0
    %2004 = vmatpush1.msra.mxu0 0.0
    %2005 = vmatprep.subr.mxu0 0.0
    %2006 = vmatpush1.msra.mxu0 0.0
    %2007 = vmatprep.subr.mxu0 0.0
    %2008 = vmatpush1.msra.mxu0 0.0
    %2009 = vmatprep.subr.mxu0 0.0
    %2010 = vmatpush1.msra.mxu0 0.0
    %2011 = vmatprep.subr.mxu0 0.0
    %2012 = vmatpush1.msra.mxu0 0.0
    %2013 = vmatprep.subr.mxu0 0.0
    %2014 = vmatpush1.msra.mxu0 0.0
    %2015 = vmatprep.subr.mxu0 0.0
    %2016 = vmatpush1.msra.mxu0 0.0
    %2017 = vmatprep.subr.mxu0 0.0
    %2018 = vmatpush1.msra.mxu0 0.0
    %2019 = vmatprep.mubr.f32.mxu0 0.0
    %2020 = vmatmul.mubr.f32.gmra.mrb[0].mxu0 %v1953
    %v2021 = vpop.f32.mrb[0].mxu0
    %v2022 = vadd.f32 %v379, %v2021
    %v2023 = vpop.f32.mrb[0].mxu0
    %2024 = vdwg.mxu0
    %s2025 = scalar_lea.vmem [#allocation14], 40
    %2026 = vst [vmem:[%s2025] sm:$0xff] %v2022
    %2027 = vmax.xlane.f32.xlu0 %v2022
    %v2028 = vpop.xlane.xlu0 %2027
    %vm2029 = vcmp.eq.f32.partialorder %v2022, %v2028
    %v2030 = vsel %vm2029, %v381, 128
    %v2031 = vand.u32 %v2030, 65535
    %v2032 = vshra.s32 %v2030, 16
    %v2033 = vcvt.s32.f32 %v2031
    %v2034 = vcvt.s32.f32 %v2032
    %2035 = vmin.xlane.f32.xlu0 %v2034
    %v2036 = vpop.xlane.xlu0 %2035
    %vm2037 = vcmp.eq.f32.partialorder %v2034, %v2036
    %v2038 = vsel %vm2037, %v2033, inf
    %2039 = vmin.xlane.f32.xlu0 %v2038
    %v2040 = vpop.xlane.xlu0 %2039
    %v2041 = vcvt.f32.s32 %v2040
    %v2042 = vcvt.f32.s32 %v2036
    %v2043 = vshll.u32 %v2042, 16
    %v2044 = vadd.s32 %v2043, %v2041
    %vm2045 = vcmp.eq.s32.totalorder %v381, %v2044
    %v2046 = vsel %vm2045, 1, 0
    %v2047 = vcvt.s32.f32 %v2046
    %2048 = vmatprep.subr.mxu0 0.0
    %2049 = vmatpush1.msra.mxu0 %v371
    %2050 = vmatprep.subr.mxu0 0.0
    %2051 = vmatpush1.msra.mxu0 %v372
    %2052 = vmatprep.subr.mxu0 0.0
    %2053 = vmatpush1.msra.mxu0 %v373
    %2054 = vmatprep.subr.mxu0 0.0
    %2055 = vmatpush1.msra.mxu0 %v374
    %2056 = vmatprep.subr.mxu0 0.0
    %2057 = vmatpush1.msra.mxu0 0.0
    %2058 = vmatprep.subr.mxu0 0.0
    %2059 = vmatpush1.msra.mxu0 0.0
    %2060 = vmatprep.subr.mxu0 0.0
    %2061 = vmatpush1.msra.mxu0 0.0
    %2062 = vmatprep.subr.mxu0 0.0
    %2063 = vmatpush1.msra.mxu0 0.0
    %2064 = vmatprep.subr.mxu0 0.0
    %2065 = vmatpush1.msra.mxu0 0.0
    %2066 = vmatprep.subr.mxu0 0.0
    %2067 = vmatpush1.msra.mxu0 0.0
    %2068 = vmatprep.subr.mxu0 0.0
    %2069 = vmatpush1.msra.mxu0 0.0
    %2070 = vmatprep.subr.mxu0 0.0
    %2071 = vmatpush1.msra.mxu0 0.0
    %2072 = vmatprep.subr.mxu0 0.0
    %2073 = vmatpush1.msra.mxu0 0.0
    %2074 = vmatprep.subr.mxu0 0.0
    %2075 = vmatpush1.msra.mxu0 0.0
    %2076 = vmatprep.subr.mxu0 0.0
    %2077 = vmatpush1.msra.mxu0 0.0
    %2078 = vmatprep.subr.mxu0 0.0
    %2079 = vmatpush1.msra.mxu0 0.0
    %2080 = vmatprep.subr.mxu0 0.0
    %2081 = vmatpush1.msra.mxu0 0.0
    %2082 = vmatprep.subr.mxu0 0.0
    %2083 = vmatpush1.msra.mxu0 0.0
    %2084 = vmatprep.subr.mxu0 0.0
    %2085 = vmatpush1.msra.mxu0 0.0
    %2086 = vmatprep.subr.mxu0 0.0
    %2087 = vmatpush1.msra.mxu0 0.0
    %2088 = vmatprep.subr.mxu0 0.0
    %2089 = vmatpush1.msra.mxu0 0.0
    %2090 = vmatprep.subr.mxu0 0.0
    %2091 = vmatpush1.msra.mxu0 0.0
    %2092 = vmatprep.subr.mxu0 0.0
    %2093 = vmatpush1.msra.mxu0 0.0
    %2094 = vmatprep.subr.mxu0 0.0
    %2095 = vmatpush1.msra.mxu0 0.0
    %2096 = vmatprep.subr.mxu0 0.0
    %2097 = vmatpush1.msra.mxu0 0.0
    %2098 = vmatprep.subr.mxu0 0.0
    %2099 = vmatpush1.msra.mxu0 0.0
    %2100 = vmatprep.subr.mxu0 0.0
    %2101 = vmatpush1.msra.mxu0 0.0
    %2102 = vmatprep.subr.mxu0 0.0
    %2103 = vmatpush1.msra.mxu0 0.0
    %2104 = vmatprep.subr.mxu0 0.0
    %2105 = vmatpush1.msra.mxu0 0.0
    %2106 = vmatprep.subr.mxu0 0.0
    %2107 = vmatpush1.msra.mxu0 0.0
    %2108 = vmatprep.subr.mxu0 0.0
    %2109 = vmatpush1.msra.mxu0 0.0
    %2110 = vmatprep.subr.mxu0 0.0
    %2111 = vmatpush1.msra.mxu0 0.0
    %2112 = vmatprep.mubr.f32.mxu0 0.0
    %2113 = vmatmul.mubr.f32.gmra.mrb[0].mxu0 %v1953
    %v2114 = vpop.f32.mrb[0].mxu0
    %v2115 = vadd.f32 0.0, %v2114
    %v2116 = vpop.f32.mrb[0].mxu0
    %2117 = vdwg.mxu0
    %2118 = vmatprep.subr.mxu0 0.0
    %2119 = vmatpush1.msra.mxu0 %v250
    %2120 = vmatprep.subr.mxu0 0.0
    %2121 = vmatpush1.msra.mxu0 %v251
    %2122 = vmatprep.subr.mxu0 0.0
    %2123 = vmatpush1.msra.mxu0 %v252
    %2124 = vmatprep.subr.mxu0 0.0
    %2125 = vmatpush1.msra.mxu0 %v253
    %2126 = vmatprep.subr.mxu0 0.0
    %2127 = vmatpush1.msra.mxu0 %v254
    %2128 = vmatprep.subr.mxu0 0.0
    %2129 = vmatpush1.msra.mxu0 %v255
    %2130 = vmatprep.subr.mxu0 0.0
    %2131 = vmatpush1.msra.mxu0 %v256
    %2132 = vmatprep.subr.mxu0 0.0
    %2133 = vmatpush1.msra.mxu0 %v257
    %2134 = vmatprep.subr.mxu0 0.0
    %2135 = vmatpush1.msra.mxu0 %v258
    %2136 = vmatprep.subr.mxu0 0.0
    %2137 = vmatpush1.msra.mxu0 %v259
    %2138 = vmatprep.subr.mxu0 0.0
    %2139 = vmatpush1.msra.mxu0 %v260
    %2140 = vmatprep.subr.mxu0 0.0
    %2141 = vmatpush1.msra.mxu0 %v261
    %2142 = vmatprep.subr.mxu0 0.0
    %2143 = vmatpush1.msra.mxu0 %v262
    %2144 = vmatprep.subr.mxu0 0.0
    %2145 = vmatpush1.msra.mxu0 %v263
    %2146 = vmatprep.subr.mxu0 0.0
    %2147 = vmatpush1.msra.mxu0 %v264
    %2148 = vmatprep.subr.mxu0 0.0
    %2149 = vmatpush1.msra.mxu0 %v265
    %2150 = vmatprep.subr.mxu0 0.0
    %2151 = vmatpush1.msra.mxu0 0.0
    %2152 = vmatprep.subr.mxu0 0.0
    %2153 = vmatpush1.msra.mxu0 0.0
    %2154 = vmatprep.subr.mxu0 0.0
    %2155 = vmatpush1.msra.mxu0 0.0
    %2156 = vmatprep.subr.mxu0 0.0
    %2157 = vmatpush1.msra.mxu0 0.0
    %2158 = vmatprep.subr.mxu0 0.0
    %2159 = vmatpush1.msra.mxu0 0.0
    %2160 = vmatprep.subr.mxu0 0.0
    %2161 = vmatpush1.msra.mxu0 0.0
    %2162 = vmatprep.subr.mxu0 0.0
    %2163 = vmatpush1.msra.mxu0 0.0
    %2164 = vmatprep.subr.mxu0 0.0
    %2165 = vmatpush1.msra.mxu0 0.0
    %2166 = vmatprep.subr.mxu0 0.0
    %2167 = vmatpush1.msra.mxu0 0.0
    %2168 = vmatprep.subr.mxu0 0.0
    %2169 = vmatpush1.msra.mxu0 0.0
    %2170 = vmatprep.subr.mxu0 0.0
    %2171 = vmatpush1.msra.mxu0 0.0
    %2172 = vmatprep.subr.mxu0 0.0
    %2173 = vmatpush1.msra.mxu0 0.0
    %2174 = vmatprep.subr.mxu0 0.0
    %2175 = vmatpush1.msra.mxu0 0.0
    %2176 = vmatprep.subr.mxu0 0.0
    %2177 = vmatpush1.msra.mxu0 0.0
    %2178 = vmatprep.subr.mxu0 0.0
    %2179 = vmatpush1.msra.mxu0 0.0
    %2180 = vmatprep.subr.mxu0 0.0
    %2181 = vmatpush1.msra.mxu0 0.0
    %2182 = vmatprep.mubr.f32.mxu0 0.0
    %2183 = vmatmul.mubr.f32.gmra.mrb[0].mxu0 %v2047
    %v2184 = vpop.f32.mrb[0].mxu0
    %v2185 = vadd.f32 %v2115, %v2184
    %v2186 = vpop.f32.mrb[0].mxu0
    %2187 = vdwg.mxu0
    %v2188 = vxor.u32 %v2185, 2147483648
    %v2189 = vmul.f32 %v2188, 1.442695
    %v2190 = vpow.pop %v2189
    %v2191 = vadd.f32 %v2190, 1.0
    %v2192 = vrcp.pop %v2191
    %v2193 = vmul.f32 1.0, %v2192
    %v2194 = vtanh.pop %v2185
    %v2195 = vmul.f32 %v2193, %v1943
    %2197 = vrot.lane.b32.xlu0 %v2194, 64
    %v2198 = vpop.permute.xlu0 %2197
    %v2200 = vmul.f32 %v2193, %v2198
    %2202 = vrot.lane.b32.xlu0 %v2200, 32
    %v2203 = vpop.permute.xlu0 %2202
    %v2205 = vadd.f32 %v2195, %v2203
    %v2206 = vtanh.pop %v2205
    %2208 = vrot.lane.b32.xlu0 %v2206, 64
    %v2209 = vpop.permute.xlu0 %2208
    %v2211 = vmul.f32 %v2193, %v2209
    %2213 = vrot.lane.b32.xlu0 %v2211, 32
    %v2214 = vpop.permute.xlu0 %2213
    %v2215 = vsel %vm382, %v2214, 0
    %2217 = vmatprep.subr.mxu0 0.0
    %2218 = vmatpush1.msra.mxu0 %v375
    %2219 = vmatprep.subr.mxu0 0.0
    %2220 = vmatpush1.msra.mxu0 %v376
    %2221 = vmatprep.subr.mxu0 0.0
    %2222 = vmatpush1.msra.mxu0 %v377
    %2223 = vmatprep.subr.mxu0 0.0
    %2224 = vmatpush1.msra.mxu0 %v378
    %2225 = vmatprep.subr.mxu0 0.0
    %2226 = vmatpush1.msra.mxu0 0.0
    %2227 = vmatprep.subr.mxu0 0.0
    %2228 = vmatpush1.msra.mxu0 0.0
    %2229 = vmatprep.subr.mxu0 0.0
    %2230 = vmatpush1.msra.mxu0 0.0
    %2231 = vmatprep.subr.mxu0 0.0
    %2232 = vmatpush1.msra.mxu0 0.0
    %2233 = vmatprep.subr.mxu0 0.0
    %2234 = vmatpush1.msra.mxu0 0.0
    %2235 = vmatprep.subr.mxu0 0.0
    %2236 = vmatpush1.msra.mxu0 0.0
    %2237 = vmatprep.subr.mxu0 0.0
    %2238 = vmatpush1.msra.mxu0 0.0
    %2239 = vmatprep.subr.mxu0 0.0
    %2240 = vmatpush1.msra.mxu0 0.0
    %2241 = vmatprep.subr.mxu0 0.0
    %2242 = vmatpush1.msra.mxu0 0.0
    %2243 = vmatprep.subr.mxu0 0.0
    %2244 = vmatpush1.msra.mxu0 0.0
    %2245 = vmatprep.subr.mxu0 0.0
    %2246 = vmatpush1.msra.mxu0 0.0
    %2247 = vmatprep.subr.mxu0 0.0
    %2248 = vmatpush1.msra.mxu0 0.0
    %2249 = vmatprep.subr.mxu0 0.0
    %2250 = vmatpush1.msra.mxu0 0.0
    %2251 = vmatprep.subr.mxu0 0.0
    %2252 = vmatpush1.msra.mxu0 0.0
    %2253 = vmatprep.subr.mxu0 0.0
    %2254 = vmatpush1.msra.mxu0 0.0
    %2255 = vmatprep.subr.mxu0 0.0
    %2256 = vmatpush1.msra.mxu0 0.0
    %2257 = vmatprep.subr.mxu0 0.0
    %2258 = vmatpush1.msra.mxu0 0.0
    %2259 = vmatprep.subr.mxu0 0.0
    %2260 = vmatpush1.msra.mxu0 0.0
    %2261 = vmatprep.subr.mxu0 0.0
    %2262 = vmatpush1.msra.mxu0 0.0
    %2263 = vmatprep.subr.mxu0 0.0
    %2264 = vmatpush1.msra.mxu0 0.0
    %2265 = vmatprep.subr.mxu0 0.0
    %2266 = vmatpush1.msra.mxu0 0.0
    %2267 = vmatprep.subr.mxu0 0.0
    %2268 = vmatpush1.msra.mxu0 0.0
    %2269 = vmatprep.subr.mxu0 0.0
    %2270 = vmatpush1.msra.mxu0 0.0
    %2271 = vmatprep.subr.mxu0 0.0
    %2272 = vmatpush1.msra.mxu0 0.0
    %2273 = vmatprep.subr.mxu0 0.0
    %2274 = vmatpush1.msra.mxu0 0.0
    %2275 = vmatprep.subr.mxu0 0.0
    %2276 = vmatpush1.msra.mxu0 0.0
    %2277 = vmatprep.subr.mxu0 0.0
    %2278 = vmatpush1.msra.mxu0 0.0
    %2279 = vmatprep.subr.mxu0 0.0
    %2280 = vmatpush1.msra.mxu0 0.0
    %2281 = vmatprep.mubr.f32.mxu0 0.0
    %2282 = vmatmul.mubr.f32.gmra.mrb[0].mxu0 %v2215
    %v2283 = vpop.f32.mrb[0].mxu0
    %v2284 = vadd.f32 %v379, %v2283
    %v2285 = vpop.f32.mrb[0].mxu0
    %2286 = vdwg.mxu0
    %s2287 = scalar_lea.vmem [#allocation14], 48
    %2288 = vst [vmem:[%s2287] sm:$0xff] %v2284
    %2289 = vmatprep.subr.mxu0 0.0
    %2290 = vmatpush1.msra.mxu0 %v371
    %2291 = vmatprep.subr.mxu0 0.0
    %2292 = vmatpush1.msra.mxu0 %v372
    %2293 = vmatprep.subr.mxu0 0.0
    %2294 = vmatpush1.msra.mxu0 %v373
    %2295 = vmatprep.subr.mxu0 0.0
    %2296 = vmatpush1.msra.mxu0 %v374
    %2297 = vmatprep.subr.mxu0 0.0
    %2298 = vmatpush1.msra.mxu0 0.0
    %2299 = vmatprep.subr.mxu0 0.0
    %2300 = vmatpush1.msra.mxu0 0.0
    %2301 = vmatprep.subr.mxu0 0.0
    %2302 = vmatpush1.msra.mxu0 0.0
    %2303 = vmatprep.subr.mxu0 0.0
    %2304 = vmatpush1.msra.mxu0 0.0
    %2305 = vmatprep.subr.mxu0 0.0
    %2306 = vmatpush1.msra.mxu0 0.0
    %2307 = vmatprep.subr.mxu0 0.0
    %2308 = vmatpush1.msra.mxu0 0.0
    %2309 = vmatprep.subr.mxu0 0.0
    %2310 = vmatpush1.msra.mxu0 0.0
    %2311 = vmatprep.subr.mxu0 0.0
    %2312 = vmatpush1.msra.mxu0 0.0
    %2313 = vmatprep.subr.mxu0 0.0
    %2314 = vmatpush1.msra.mxu0 0.0
    %2315 = vmatprep.subr.mxu0 0.0
    %2316 = vmatpush1.msra.mxu0 0.0
    %2317 = vmatprep.subr.mxu0 0.0
    %2318 = vmatpush1.msra.mxu0 0.0
    %2319 = vmatprep.subr.mxu0 0.0
    %2320 = vmatpush1.msra.mxu0 0.0
    %2321 = vmatprep.subr.mxu0 0.0
    %2322 = vmatpush1.msra.mxu0 0.0
    %2323 = vmatprep.subr.mxu0 0.0
    %2324 = vmatpush1.msra.mxu0 0.0
    %2325 = vmatprep.subr.mxu0 0.0
    %2326 = vmatpush1.msra.mxu0 0.0
    %2327 = vmatprep.subr.mxu0 0.0
    %2328 = vmatpush1.msra.mxu0 0.0
    %2329 = vmatprep.subr.mxu0 0.0
    %2330 = vmatpush1.msra.mxu0 0.0
    %2331 = vmatprep.subr.mxu0 0.0
    %2332 = vmatpush1.msra.mxu0 0.0
    %2333 = vmatprep.subr.mxu0 0.0
    %2334 = vmatpush1.msra.mxu0 0.0
    %2335 = vmatprep.subr.mxu0 0.0
    %2336 = vmatpush1.msra.mxu0 0.0
    %2337 = vmatprep.subr.mxu0 0.0
    %2338 = vmatpush1.msra.mxu0 0.0
    %2339 = vmatprep.subr.mxu0 0.0
    %2340 = vmatpush1.msra.mxu0 0.0
    %2341 = vmatprep.subr.mxu0 0.0
    %2342 = vmatpush1.msra.mxu0 0.0
    %2343 = vmatprep.subr.mxu0 0.0
    %2344 = vmatpush1.msra.mxu0 0.0
    %2345 = vmatprep.subr.mxu0 0.0
    %2346 = vmatpush1.msra.mxu0 0.0
    %2347 = vmatprep.subr.mxu0 0.0
    %2348 = vmatpush1.msra.mxu0 0.0
    %2349 = vmatprep.subr.mxu0 0.0
    %2350 = vmatpush1.msra.mxu0 0.0
    %2351 = vmatprep.subr.mxu0 0.0
    %2352 = vmatpush1.msra.mxu0 0.0
    %2353 = vmatprep.mubr.f32.mxu0 0.0
    %2354 = vmatmul.mubr.f32.gmra.mrb[0].mxu0 %v2215
    %v2355 = vpop.f32.mrb[0].mxu0
    %v2356 = vadd.f32 0.0, %v2355
    %v2357 = vpop.f32.mrb[0].mxu0
    %2358 = vdwg.mxu0
    %v2359 = vadd.f32 %v360, %v2356
    %v2360 = vxor.u32 %v2359, 2147483648
    %v2361 = vmul.f32 %v2360, 1.442695
    %v2362 = vpow.pop %v2361
    %v2363 = vadd.f32 %v2362, 1.0
    %v2364 = vrcp.pop %v2363
    %v2365 = vmul.f32 1.0, %v2364
    %v2366 = vtanh.pop %v2359
    %v2367 = vmul.f32 %v2365, %v2205
    %2369 = vrot.lane.b32.xlu0 %v2366, 64
    %v2370 = vpop.permute.xlu0 %2369
    %v2372 = vmul.f32 %v2365, %v2370
    %2374 = vrot.lane.b32.xlu0 %v2372, 32
    %v2375 = vpop.permute.xlu0 %2374
    %v2377 = vadd.f32 %v2367, %v2375
    %v2378 = vtanh.pop %v2377
    %2380 = vrot.lane.b32.xlu0 %v2378, 64
    %v2381 = vpop.permute.xlu0 %2380
    %v2383 = vmul.f32 %v2365, %v2381
    %2385 = vrot.lane.b32.xlu0 %v2383, 32
    %v2386 = vpop.permute.xlu0 %2385
    %v2387 = vsel %vm382, %v2386, 0
    %2389 = vmatprep.subr.mxu0 0.0
    %2390 = vmatpush1.msra.mxu0 %v375
    %2391 = vmatprep.subr.mxu0 0.0
    %2392 = vmatpush1.msra.mxu0 %v376
    %2393 = vmatprep.subr.mxu0 0.0
    %2394 = vmatpush1.msra.mxu0 %v377
    %2395 = vmatprep.subr.mxu0 0.0
    %2396 = vmatpush1.msra.mxu0 %v378
    %2397 = vmatprep.subr.mxu0 0.0
    %2398 = vmatpush1.msra.mxu0 0.0
    %2399 = vmatprep.subr.mxu0 0.0
    %2400 = vmatpush1.msra.mxu0 0.0
    %2401 = vmatprep.subr.mxu0 0.0
    %2402 = vmatpush1.msra.mxu0 0.0
    %2403 = vmatprep.subr.mxu0 0.0
    %2404 = vmatpush1.msra.mxu0 0.0
    %2405 = vmatprep.subr.mxu0 0.0
    %2406 = vmatpush1.msra.mxu0 0.0
    %2407 = vmatprep.subr.mxu0 0.0
    %2408 = vmatpush1.msra.mxu0 0.0
    %2409 = vmatprep.subr.mxu0 0.0
    %2410 = vmatpush1.msra.mxu0 0.0
    %2411 = vmatprep.subr.mxu0 0.0
    %2412 = vmatpush1.msra.mxu0 0.0
    %2413 = vmatprep.subr.mxu0 0.0
    %2414 = vmatpush1.msra.mxu0 0.0
    %2415 = vmatprep.subr.mxu0 0.0
    %2416 = vmatpush1.msra.mxu0 0.0
    %2417 = vmatprep.subr.mxu0 0.0
    %2418 = vmatpush1.msra.mxu0 0.0
    %2419 = vmatprep.subr.mxu0 0.0
    %2420 = vmatpush1.msra.mxu0 0.0
    %2421 = vmatprep.subr.mxu0 0.0
    %2422 = vmatpush1.msra.mxu0 0.0
    %2423 = vmatprep.subr.mxu0 0.0
    %2424 = vmatpush1.msra.mxu0 0.0
    %2425 = vmatprep.subr.mxu0 0.0
    %2426 = vmatpush1.msra.mxu0 0.0
    %2427 = vmatprep.subr.mxu0 0.0
    %2428 = vmatpush1.msra.mxu0 0.0
    %2429 = vmatprep.subr.mxu0 0.0
    %2430 = vmatpush1.msra.mxu0 0.0
    %2431 = vmatprep.subr.mxu0 0.0
    %2432 = vmatpush1.msra.mxu0 0.0
    %2433 = vmatprep.subr.mxu0 0.0
    %2434 = vmatpush1.msra.mxu0 0.0
    %2435 = vmatprep.subr.mxu0 0.0
    %2436 = vmatpush1.msra.mxu0 0.0
    %2437 = vmatprep.subr.mxu0 0.0
    %2438 = vmatpush1.msra.mxu0 0.0
    %2439 = vmatprep.subr.mxu0 0.0
    %2440 = vmatpush1.msra.mxu0 0.0
    %2441 = vmatprep.subr.mxu0 0.0
    %2442 = vmatpush1.msra.mxu0 0.0
    %2443 = vmatprep.subr.mxu0 0.0
    %2444 = vmatpush1.msra.mxu0 0.0
    %2445 = vmatprep.subr.mxu0 0.0
    %2446 = vmatpush1.msra.mxu0 0.0
    %2447 = vmatprep.subr.mxu0 0.0
    %2448 = vmatpush1.msra.mxu0 0.0
    %2449 = vmatprep.subr.mxu0 0.0
    %2450 = vmatpush1.msra.mxu0 0.0
    %2451 = vmatprep.subr.mxu0 0.0
    %2452 = vmatpush1.msra.mxu0 0.0
    %2453 = vmatprep.mubr.f32.mxu0 0.0
    %2454 = vmatmul.mubr.f32.gmra.mrb[0].mxu0 %v2387
    %v2455 = vpop.f32.mrb[0].mxu0
    %v2456 = vadd.f32 %v379, %v2455
    %v2457 = vpop.f32.mrb[0].mxu0
    %2458 = vdwg.mxu0
    %s2459 = scalar_lea.vmem [#allocation14], 56
    %2460 = vst [vmem:[%s2459] sm:$0xff] %v2456
    // Predicated region
    $region62: #{tpu_custom_call.1} parent=1 // pred_check
      _
    $region63: #{tpu_custom_call.1} parent=1 // pred_check_branch
      %2462 = sbr.rel (0) target = $region65
    $region64: #{tpu_custom_call.1} parent=1 // pred_region
      %s2464 = ssub.s32 1024, 1024
      %2465 = vsyncadd [#allocation4], %s2464
      %s2466 = sshll.u32 [#allocation14], 4
      %s2467 = int_to_ptr.vmem [resolvable:$true] %s2466
      %2472 = dma.vmem_to_hbm [thread:$0]  %s2467, 1024, %s8, [#allocation4], 128, 128, 8
    $region65: #{tpu_custom_call.1} parent=1 // pred_fallthru
      _
    // Predicated region
    $region66: #{tpu_custom_call.1} parent=1 // pred_check
      _
    $region67: #{tpu_custom_call.1} parent=1 // pred_check_branch
      %2474 = sbr.rel (0) target = $region69
    $region68: #{tpu_custom_call.1} parent=1 // pred_region
      %2475 = dma.done [#allocation4], 1024
    $region69: #{tpu_custom_call.1} parent=1 // pred_fallthru
      _
    %2476 = vsyncpa [#allocation3], 1
    %2477 = vsyncpa [#allocation6], 1
    %2478 = vsyncpa [#allocation9], 1
    %2479 = vsyncpa [#allocation12], 1
    %2480 = vsyncpa [#allocation4], 1

</llo_original>
